<compile_context>
chip_gen: v7x
topology: tpu7x:2x2x1
jax: 0.10.0
libtpu: 0.0.40
codegen_flags: <defaults>
</compile_context>

<pallas_src>
import functools

import jax
import jax.numpy as jnp
from jax.experimental import pallas as pl
from jax.experimental.pallas import tpu as pltpu


def qkv_proj_kernel(x_ref, wqkv_ref, qkv_ref):
    # x_ref: (1, TQ, C) bf16 ; wqkv_ref: (C, 3C) bf16 ; qkv_ref: (1, TQ, 3C) bf16
    x = x_ref[0]
    qkv = jnp.dot(x, wqkv_ref[...], preferred_element_type=jnp.float32)
    qkv_ref[0] = qkv.astype(qkv_ref.dtype)


def mha_attn_kernel(qkv_ref, wproj_ref, bproj_ref, o_ref, *, n_head, scale, tq):
    # qkv_ref : (1, T, 3C) bf16 -- full-sequence fused QKV for this batch element
    # wproj_ref: (C, C) bf16 ; bproj_ref: (1, C) f32 ; o_ref: (1, TQ, C) f32
    T = qkv_ref.shape[1]
    C = qkv_ref.shape[2] // 3
    hs = C // n_head

    q0 = pl.multiple_of(pl.program_id(1) * tq, tq)     # query-tile row offset

    q_all = qkv_ref[0, pl.ds(q0, tq), 0:C]              # (TQ, C) bf16
    k_all = qkv_ref[0, :, C:2 * C]                      # (T,  C) bf16
    v_all = qkv_ref[0, :, 2 * C:3 * C]                  # (T,  C) bf16

    # causal mask for this (TQ, T) tile (no full (T,T) mask materialized)
    row = q0 + jax.lax.broadcasted_iota(jnp.int32, (tq, T), 0)
    col = jax.lax.broadcasted_iota(jnp.int32, (tq, T), 1)
    causal = row >= col
    neg_big = jnp.float32(-1e30)   # finite: no NaN risk if a row were fully masked

    acc = jnp.zeros((tq, C), jnp.float32)
    for h in range(n_head):                             # static unroll (n_head small)
        sl = slice(h * hs, (h + 1) * hs)
        q = q_all[:, sl]
        k = k_all[:, sl]
        v = v_all[:, sl]
        # scores = q @ k^T  (contract on head dim, no explicit transpose)
        s = jax.lax.dot_general(q, k, (((1,), (1,)), ((), ())),
                                preferred_element_type=jnp.float32) * scale
        s = jnp.where(causal, s, neg_big)
        s = s - jnp.max(s, axis=-1, keepdims=True)
        p = jnp.exp(s)
        p = p * pl.reciprocal(jnp.sum(p, axis=-1, keepdims=True), approx=True)
        o = jnp.dot(p.astype(jnp.bfloat16), v, preferred_element_type=jnp.float32)
        # fold "concat heads -> output projection" into a per-head accumulation
        acc = acc + jnp.dot(o.astype(jnp.bfloat16), wproj_ref[sl, :],
                            preferred_element_type=jnp.float32)

    # attention-weight / output dropout: identity (inference mode)
    o_ref[0] = (acc + bproj_ref[...]).astype(o_ref.dtype)


def mha_forward(x, params, n_head, *, tq=None):
    """Causal multi-head self-attention, equivalent to MultiHeadAttention.forward
    in eval mode.  Weights are (in_features, out_features): y = x @ W (+ b)."""
    B, T, C = x.shape
    assert C % n_head == 0
    if tq is None:
        tq = min(T, 128)
    assert T % tq == 0, "sequence length must be a multiple of the query tile"
    n_qt = T // tq

    # Fused QKV weight: per-head q/k/v weights concatenated along the output dim.
    wqkv = jnp.concatenate(
        [params["wq"], params["wk"], params["wv"]], axis=1).astype(jnp.bfloat16)
    wproj = params["wproj"].astype(jnp.bfloat16)
    bproj = params["bproj"].astype(jnp.float32)
    x_bf16 = x.astype(jnp.bfloat16)

    cparams = pltpu.CompilerParams(
        dimension_semantics=("parallel", "parallel"),
        vmem_limit_bytes=32 * 1024 * 1024,
    )
    # Whole-array VMEM residency: single copy, no double-buffering of weights.
    weight_spec = pl.BlockSpec(memory_space=pltpu.MemorySpace.VMEM)

    # ---- kernel 1: fused QKV projection, tiled over (batch, seq tile) ----
    qkv = pl.pallas_call(
        qkv_proj_kernel,
        out_shape=jax.ShapeDtypeStruct((B, T, 3 * C), jnp.bfloat16),
        grid_spec=pltpu.PrefetchScalarGridSpec(
            num_scalar_prefetch=0,
            grid=(B, n_qt),
            in_specs=[
                pl.BlockSpec((1, tq, C), lambda b, t: (b, t, 0)),
                weight_spec,                       # wqkv (C, 3C)
            ],
            out_specs=pl.BlockSpec((1, tq, 3 * C), lambda b, t: (b, t, 0)),
        ),
        compiler_params=cparams,
    )(x_bf16, wqkv)

    # ---- kernel 2: causal attention + folded output projection ----
    # NOTE: scale uses C = n_embed (not head_size), exactly as the PyTorch
    # reference (`C ** -0.5` with C = x.shape[-1]).
    kernel = functools.partial(
        mha_attn_kernel, n_head=n_head, scale=float(C) ** (-0.5), tq=tq)
    out = pl.pallas_call(
        kernel,
        out_shape=jax.ShapeDtypeStruct((B, T, C), x.dtype),
        grid_spec=pltpu.PrefetchScalarGridSpec(
            num_scalar_prefetch=0,
            grid=(B, n_qt),
            in_specs=[
                # full-sequence QKV of this batch element; the block index is
                # constant along the query-tile axis, so it is DMA'd once per b.
                pl.BlockSpec((1, T, 3 * C), lambda b, t: (b, 0, 0)),
                weight_spec,                       # wproj (C, C)
                weight_spec,                       # bproj (1, C)
            ],
            out_specs=pl.BlockSpec((1, tq, C), lambda b, t: (b, t, 0)),
        ),
        compiler_params=cparams,
    )(qkv, wproj, bproj)
    return out


def ref_forward(x, p, n_head):
    """Pure-JAX (f32) reference reproducing MultiHeadAttention.forward (eval)."""
    B, T, C = x.shape
    hs = C // n_head
    Q = x @ p["wq"]
    K = x @ p["wk"]
    V = x @ p["wv"]
    mask = jnp.tril(jnp.ones((T, T), bool))
    outs = []
    for h in range(n_head):
        q, k, v = (A[..., h * hs:(h + 1) * hs] for A in (Q, K, V))
        wei = jnp.einsum("btd,bsd->bts", q, k) * (C ** -0.5)
        wei = jnp.where(mask, wei, -jnp.inf)
        wei = jax.nn.softmax(wei, axis=-1)
        outs.append(jnp.einsum("bts,bsd->btd", wei, v))
    return jnp.concatenate(outs, -1) @ p["wproj"] + p["bproj"]


if __name__ == "__main__":
    # shapes consistent with the module: n_embed=384, T <= block_size=256
    B, T, n_embed, n_head = 2, 128, 384, 6   # head_size = 64

    key = jax.random.PRNGKey(0)
    ks = jax.random.split(key, 6)
    s = 0.02
    params = {
        "wq":    s * jax.random.normal(ks[0], (n_embed, n_embed), jnp.float32),
        "wk":    s * jax.random.normal(ks[1], (n_embed, n_embed), jnp.float32),
        "wv":    s * jax.random.normal(ks[2], (n_embed, n_embed), jnp.float32),
        "wproj": s * jax.random.normal(ks[3], (n_embed, n_embed), jnp.float32),
        "bproj": s * jax.random.normal(ks[4], (1, n_embed), jnp.float32),
    }
    x = jax.random.normal(ks[5], (B, T, n_embed), jnp.float32)

    out = mha_forward(x, params, n_head, tq=64)
    out = jax.block_until_ready(out)

    ref = ref_forward(x, params, n_head)
    assert out.shape == (B, T, n_embed)
    err = float(jnp.max(jnp.abs(out - ref)))
    # bf16 matmul operands + approx reciprocal vs f32 reference
    assert jnp.allclose(out, ref, atol=2e-2, rtol=2e-2), f"mismatch vs ref: {err}"

    print("KERNEL_OK")
</pallas_src>

<mosaic_0001>
module attributes {stable_mosaic.version = 11 : i64} {
  func.func @qkv_proj_kernel(%arg0: i32, %arg1: i32, %arg2: memref<1x64x384xbf16, #tpu.memory_space<vmem>>, %arg3: memref<384x1152xbf16, #tpu.memory_space<vmem>>, %arg4: memref<1x64x1152xbf16, #tpu.memory_space<vmem>>) attributes {dimension_semantics = [#tpu.dimension_semantics<parallel>, #tpu.dimension_semantics<parallel>], iteration_bounds = array<i64: 2, 2>, scalar_prefetch = 0 : i64, scratch_operands = 0 : i64, tpu.core_type = #tpu.core_type<tc>, window_params = [{transform_indices = @transform_0, window_bounds = array<i64: 1, 64, 384>}, {pipeline_mode = #tpu.pipeline_mode<synchronous>, transform_indices = @transform_1, window_bounds = array<i64: 384, 1152>}, {transform_indices = @transform_2, window_bounds = array<i64: 1, 64, 1152>}]} {
    %c0 = arith.constant 0 : index
    %c0_0 = arith.constant 0 : index
    %c0_1 = arith.constant 0 : index
    %0 = vector.load %arg2[%c0, %c0_0, %c0_1] : memref<1x64x384xbf16, #tpu.memory_space<vmem>>, vector<1x64x384xbf16>
    %1 = vector.shape_cast %0 : vector<1x64x384xbf16> to vector<64x384xbf16>
    %c0_2 = arith.constant 0 : index
    %c0_3 = arith.constant 0 : index
    %2 = vector.load %arg3[%c0_2, %c0_3] : memref<384x1152xbf16, #tpu.memory_space<vmem>>, vector<384x1152xbf16>
    %cst = arith.constant dense<0.000000e+00> : vector<64x1152xf32>
    %3 = tpu.matmul %1, %2, %cst {dimension_numbers = #tpu.dot_dimension_numbers<[1], [0], [0], [1], [0, 0, 1, 1], [], []>} : vector<64x384xbf16>, vector<384x1152xbf16>, vector<64x1152xf32> -> vector<64x1152xf32>
    %4 = arith.truncf %3 : vector<64x1152xf32> to vector<64x1152xbf16>
    %c0_4 = arith.constant 0 : index
    %c0_5 = arith.constant 0 : index
    %c0_6 = arith.constant 0 : index
    %5 = vector.load %arg4[%c0_4, %c0_5, %c0_6] : memref<1x64x1152xbf16, #tpu.memory_space<vmem>>, vector<1x64x1152xbf16>
    %6 = vector.shape_cast %5 : vector<1x64x1152xbf16> to vector<64x1152xbf16>
    %7 = vector.shape_cast %4 : vector<64x1152xbf16> to vector<1x64x1152xbf16>
    tpu.vector_store %arg4[%c0_4, %c0_5, %c0_6], %7 {strides = array<i32>} : memref<1x64x1152xbf16, #tpu.memory_space<vmem>>, vector<1x64x1152xbf16>,
    return
  }
  func.func @transform_0(%arg0: i32, %arg1: i32) -> (i32, i32, i32) {
    %c0_i32 = arith.constant 0 : i32
    %c0_i32_0 = arith.constant 0 : i32
    return %arg0, %arg1, %c0_i32 : i32, i32, i32
  }
  func.func @transform_1(%arg0: i32, %arg1: i32) -> (i32, i32) {
    %c0_i32 = arith.constant 0 : i32
    %c0_i32_0 = arith.constant 0 : i32
    %c0_i32_1 = arith.constant 0 : i32
    return %c0_i32, %c0_i32_0 : i32, i32
  }
  func.func @transform_2(%arg0: i32, %arg1: i32) -> (i32, i32, i32) {
    %c0_i32 = arith.constant 0 : i32
    %c0_i32_0 = arith.constant 0 : i32
    return %arg0, %arg1, %c0_i32 : i32, i32, i32
  }
}

</mosaic_0001>

<llo_original>
// kernel: tpu_custom_call.1
$region0: #{tpu_custom_call.1}
  #allocation0 [shape = 'u32[]', space=smem, size = 0x4, offset = 0x4, fixed_abs, tag = 'smem constant byte address 0x4 - core index']
  #allocation1 [shape = 'u32[144,128]{1,0:T(1,128)}', space=vmem, size = 0x12000, scoped, tag = 'internal scratch']
  %s0 = inlined_call_operand.hbm [shape: bf16[2,128,384], index: 0, kind: input, shape index: {}]
  %s1 = inlined_call_operand.hbm [shape: bf16[384,1152], index: 1, kind: input, shape index: {}]
  %s2 = inlined_call_operand.hbm [shape: bf16[2,128,1152], index: 2, kind: output, shape index: {}]
  %s3 = sld [smem:[#allocation0]]
  $region49: #{tpu_custom_call.1} parent=0
    _
  %s5 = ssub.s32 1, %s3
  %s6 = scalar_select 0, %s5, %s3
  $region1: #{tpu_custom_call.1} parent=0
    #allocation2 [shape = 'u8[98304]{0}', space=vmem, size = 0x18000, scoped, tag = 'input window, operand 0']
    #allocation3 [shape = 's32[2]{0}', space=sflag, size = 0x8, scoped, tag = 'scoped memory for tpu_custom_call.1']
    #allocation4 [shape = 's32[2]{0}', space=sflag, size = 0x8, scoped, tag = 'scoped memory for tpu_custom_call.1']
    #allocation5 [shape = 'u8[884736]{0}', space=vmem, size = 0xd8000, scoped, tag = 'input window, operand 1, single buffered']
    #allocation6 [shape = 's32[1]{0}', space=sflag, size = 0x4, scoped, tag = 'scoped memory for tpu_custom_call.1']
    #allocation7 [shape = 'u8[294912]{0}', space=vmem, size = 0x48000, scoped, tag = 'output window, operand 0']
    %7 = vsyncpa [#allocation3], 0
    %s8 = scalar_lea.sflag [#allocation3], 1
    %9 = vsyncpa %s8, 0
    %10 = vsyncpa [#allocation6], 0
    %11 = vsyncpa [#allocation4], 0
    %s12 = scalar_lea.sflag [#allocation4], 1
    %13 = vsyncpa %s12, 0
    loop: start=0, step=1, limit=6
    $region2: #{tpu_custom_call.1} parent=1 // loop_pre_header
      _
    $region3: #{tpu_custom_call.1} parent=1 // loop_header
      %s15 = sphi 0, %s19
      %p16 = scmp.ge.s32.totalorder %s15, 6
      %s22 = sphi 0, %s34
      %s23 = sphi 0, %s30
      %s24 = sphi 0, %s22
      %s25 = sphi 0, %s23
      %s26 = sphi 0, %s24
      %s27 = sphi 0, %s25
      %s39 = sphi 0, %s41
      %s42 = sphi 0, %s39
      %s43 = sphi 0, %s42
      %s59 = sphi 0, %s43
      %s63 = sphi 0, %s63
      %s65 = sphi 0, %s63
      %s66 = sphi 0, %s65
      %s80 = sphi 0, %s66
      %s88 = sphi 0, %s90
      %s91 = sphi 0, %s88
      %s92 = sphi 0, %s91
      %s108 = sphi 0, %s92
    $region4: #{tpu_custom_call.1} parent=1 // loop_header_branch
      %18 = sbr.rel (%p16) target = $region8
    $region5: #{tpu_custom_call.1} parent=1 // loop_body
      %s20 = ssub.s32 %s15, 1
      %s21 = ssub.s32 %s15, 2
      %s28 = sadd.s32 1, %s23
      %p29 = scmp.ge.s32.totalorder %s28, 2
      %s30 = scalar_select %p29, 0, %s28
      %s31 = sadd.s32 1, %s22
      %s32 = scalar_select %p29, %s31, %s22
      %p33 = scmp.ge.s32.totalorder %s32, 2
      %s34 = scalar_select %p33, 0, %s32
      %s35 = ssub.s32 %s22, %s34
      %s36 = ssub.s32 %s23, %s30
      %s37 = sor.u32 %s35, %s36
      %p38 = scmp.eq.s32.totalorder %s37, 0
      %s40 = sadd.s32 %s39, 1
      %s41 = scalar_select %p38, %s39, %s40
      %p44 = pneg %p38
      %p45 = scmp.eq.s32.totalorder %s15, 3
      %p46 = por %p44, %p45
      %p47 = scmp.ne.s32.totalorder %s39, %s42
      %p48 = scmp.eq.s32.totalorder %s15, 0
      %p49 = por %p47, %p48
      %p50 = scmp.ne.s32.totalorder %s39, %s42
      %p51 = scmp.eq.s32.totalorder %s20, 3
      %p52 = por %p50, %p51
      %p53 = scmp.ne.s32.totalorder %s42, %s43
      %p54 = scmp.eq.s32.totalorder %s20, 0
      %p55 = por %p53, %p54
      %p56 = scmp.ne.s32.totalorder %s42, %s43
      %p57 = scmp.eq.s32.totalorder %s21, 3
      %p58 = por %p56, %p57
      %p60 = scmp.ne.s32.totalorder %s43, %s59
      %p61 = scmp.eq.s32.totalorder %s21, 0
      %p62 = por %p60, %p61
      %s64 = sadd.s32 %s63, 1
      %p67 = scmp.eq.s32.totalorder %s15, 3
      %p68 = scmp.ne.s32.totalorder %s63, %s65
      %p69 = scmp.eq.s32.totalorder %s15, 0
      %p70 = por %p68, %p69
      %p71 = scmp.ne.s32.totalorder %s63, %s65
      %p72 = scmp.eq.s32.totalorder %s20, 3
      %p73 = por %p71, %p72
      %p74 = scmp.ne.s32.totalorder %s65, %s66
      %p75 = scmp.eq.s32.totalorder %s20, 0
      %p76 = por %p74, %p75
      %p77 = scmp.ne.s32.totalorder %s65, %s66
      %p78 = scmp.eq.s32.totalorder %s21, 3
      %p79 = por %p77, %p78
      %p81 = scmp.ne.s32.totalorder %s66, %s80
      %p82 = scmp.eq.s32.totalorder %s21, 0
      %p83 = por %p81, %p82
      %s84 = ssub.s32 %s22, %s34
      %s85 = ssub.s32 %s23, %s30
      %s86 = sor.u32 %s84, %s85
      %p87 = scmp.eq.s32.totalorder %s86, 0
      %s89 = sadd.s32 %s88, 1
      %s90 = scalar_select %p87, %s88, %s89
      %p93 = pneg %p87
      %p94 = scmp.eq.s32.totalorder %s15, 3
      %p95 = por %p93, %p94
      %p96 = scmp.ne.s32.totalorder %s88, %s91
      %p97 = scmp.eq.s32.totalorder %s15, 0
      %p98 = por %p96, %p97
      %p99 = scmp.ne.s32.totalorder %s88, %s91
      %p100 = scmp.eq.s32.totalorder %s20, 3
      %p101 = por %p99, %p100
      %p102 = scmp.ne.s32.totalorder %s91, %s92
      %p103 = scmp.eq.s32.totalorder %s20, 0
      %p104 = por %p102, %p103
      %p105 = scmp.ne.s32.totalorder %s91, %s92
      %p106 = scmp.eq.s32.totalorder %s21, 3
      %p107 = por %p105, %p106
      %p109 = scmp.ne.s32.totalorder %s92, %s108
      %p110 = scmp.eq.s32.totalorder %s21, 0
      %p111 = por %p109, %p110
      %p112 = scmp.le.s32.totalorder 1, %s15
      %p113 = scmp.lt.s32.totalorder %s15, 5
      %p114 = pnand %p112, %p113
      %p115 = pneg %p114
      // Predicated region
      $region9: #{tpu_custom_call.1} parent=5 // pred_check
        _
      $region10: #{tpu_custom_call.1} parent=5 // pred_check_branch
        %117 = sbr.rel (%p114) target = $region12
      $region11: #{tpu_custom_call.1} parent=5 // pred_region
        %s118 = ssub.s32 %s15, 1
        // Predicated region
        $region13: #{tpu_custom_call.1} parent=11 // pred_check
          %p119 = pneg %p76
        $region14: #{tpu_custom_call.1} parent=11 // pred_check_branch
          %121 = sbr.rel (%p119) target = $region16
        $region15: #{tpu_custom_call.1} parent=11 // pred_region
          %s123 = ssub.s32 27648, 27648
          %124 = vsyncadd [#allocation6], %s123
          %s125 = sshll.u32 [#allocation5], 4
          %s126 = int_to_ptr.vmem [resolvable:$true] %s125
          %131 = dma.hbm_to_vmem [thread:$0]  %s1, 27648, %s126, [#allocation6], 576, 576, 36
        $region16: #{tpu_custom_call.1} parent=11 // pred_fallthru
          _
      $region12: #{tpu_custom_call.1} parent=5 // pred_fallthru
        _
      %p132 = scmp.lt.s32.totalorder %s15, 4
      // Predicated region
      $region17: #{tpu_custom_call.1} parent=5 // pred_check
        %p133 = pneg %p132
      $region18: #{tpu_custom_call.1} parent=5 // pred_check_branch
        %135 = sbr.rel (%p133) target = $region20
      $region19: #{tpu_custom_call.1} parent=5 // pred_region
        // Predicated region
        $region21: #{tpu_custom_call.1} parent=19 // pred_check
          %p136 = pneg %p49
        $region22: #{tpu_custom_call.1} parent=19 // pred_check_branch
          %138 = sbr.rel (%p136) target = $region24
        $region23: #{tpu_custom_call.1} parent=19 // pred_region
          %s139 = sand.u32 %s39, 1
          %s140 = scalar_lea.sflag [#allocation3], %s139
          %s141 = sand.u32 %s39, 1
          %s142 = smul.addr %s141, 96
          %s143 = scalar_lea.vmem [#allocation2], %s142
          %s144 = smul.u32 8, %s23
          %s146 = ssub.s32 1536, 1536
          %147 = vsyncadd %s140, %s146
          %s148 = smul.addr %s144, 3
          %s149 = smul.addr %s22, 48
          %s150 = sadd.s32 %s148, %s149
          %s151 = smul.addr %s150, 64
          %s152 = scalar_lea.hbm %s0, %s151
          %s153 = sshll.u32 %s143, 4
          %s154 = int_to_ptr.vmem [resolvable:$true] %s153
          %159 = dma.hbm_to_vmem [thread:$0]  %s152, 1536, %s154, %s140, 192, 192, 12
        $region24: #{tpu_custom_call.1} parent=19 // pred_fallthru
          _
      $region20: #{tpu_custom_call.1} parent=5 // pred_fallthru
        _
      %p160 = scmp.le.s32.totalorder 1, %s15
      %p161 = scmp.lt.s32.totalorder %s15, 5
      %p162 = pnand %p160, %p161
      %p163 = pneg %p162
      // Predicated region
      $region25: #{tpu_custom_call.1} parent=5 // pred_check
        _
      $region26: #{tpu_custom_call.1} parent=5 // pred_check_branch
        %165 = sbr.rel (%p162) target = $region28
      $region27: #{tpu_custom_call.1} parent=5 // pred_region
        %s166 = ssub.s32 %s15, 1
        %s167 = sand.u32 %s42, 1
        %s168 = scalar_lea.sflag [#allocation3], %s167
        %s169 = sand.u32 %s42, 1
        %s170 = smul.addr %s169, 96
        %s171 = scalar_lea.vmem [#allocation2], %s170
        // Predicated region
        $region29: #{tpu_custom_call.1} parent=27 // pred_check
          %p172 = pneg %p55
        $region30: #{tpu_custom_call.1} parent=27 // pred_check_branch
          %174 = sbr.rel (%p172) target = $region32
        $region31: #{tpu_custom_call.1} parent=27 // pred_region
          %175 = dma.done %s168, 1536
        $region32: #{tpu_custom_call.1} parent=27 // pred_fallthru
          _
        // Predicated region
        $region33: #{tpu_custom_call.1} parent=27 // pred_check
          %p176 = pneg %p76
        $region34: #{tpu_custom_call.1} parent=27 // pred_check_branch
          %178 = sbr.rel (%p176) target = $region36
        $region35: #{tpu_custom_call.1} parent=27 // pred_region
          %179 = dma.done [#allocation6], 27648
        $region36: #{tpu_custom_call.1} parent=27 // pred_fallthru
          _
        %s180 = sand.u32 %s42, 1
        %s181 = scalar_lea.sflag [#allocation3], %s180
        %s182 = sand.u32 %s42, 1
        %s183 = smul.addr %s182, 96
        %s184 = scalar_lea.vmem [#allocation2], %s183
        %p185 = pneg %p55
        %p186 = pneg %p52
        %p187 = pneg %p76
        %p188 = pneg %p73
        %p189 = pneg %p104
        %p190 = pneg %p101
        %s191 = sand.u32 %s91, 1
        %s192 = scalar_lea.sflag [#allocation4], %s191
        %s193 = sand.u32 %s91, 1
        %s194 = smul.addr %s193, 288
        %s195 = scalar_lea.vmem [#allocation7], %s194
        %s196 = smul.u32 8, %s25
        %s197 = smul.u32 8, %s25
        %v199 = vld [vmem:[%s171] sm:$0xff]
        %v200 = vld [vmem:[%s171 + $0x8] sm:$0xf]
        %v201 = vld [vmem:[%s171 + $0xc] sm:$0xff]
        %v202 = vld [vmem:[%s171 + $0x14] sm:$0xf]
        %v203 = vld [vmem:[%s171 + $0x18] sm:$0xff]
        %v204 = vld [vmem:[%s171 + $0x20] sm:$0xf]
        %v205 = vld [vmem:[%s171 + $0x24] sm:$0xff]
        %v206 = vld [vmem:[%s171 + $0x2c] sm:$0xf]
        %v207 = vld [vmem:[%s171 + $0x30] sm:$0xff]
        %v208 = vld [vmem:[%s171 + $0x38] sm:$0xf]
        %v209 = vld [vmem:[%s171 + $0x3c] sm:$0xff]
        %v210 = vld [vmem:[%s171 + $0x44] sm:$0xf]
        %v211 = vld [vmem:[%s171 + $0x48] sm:$0xff]
        %v212 = vld [vmem:[%s171 + $0x50] sm:$0xf]
        %v213 = vld [vmem:[%s171 + $0x54] sm:$0xff]
        %v214 = vld [vmem:[%s171 + $0x5c] sm:$0xf]
        %v215 = vld [vmem:[#allocation5] sm:$0xff]
        %v216 = vld [vmem:[#allocation5 + $0x8] sm:$0xff]
        %v217 = vld [vmem:[#allocation5 + $0x10] sm:$0xff]
        %v218 = vld [vmem:[#allocation5 + $0x18] sm:$0xff]
        %v219 = vld [vmem:[#allocation5 + $0x20] sm:$0xf]
        %v220 = vld [vmem:[#allocation5 + $0x24] sm:$0xff]
        %v221 = vld [vmem:[#allocation5 + $0x2c] sm:$0xff]
        %v222 = vld [vmem:[#allocation5 + $0x34] sm:$0xff]
        %v223 = vld [vmem:[#allocation5 + $0x3c] sm:$0xff]
        %v224 = vld [vmem:[#allocation5 + $0x44] sm:$0xf]
        %v225 = vld [vmem:[#allocation5 + $0x48] sm:$0xff]
        %v226 = vld [vmem:[#allocation5 + $0x50] sm:$0xff]
        %v227 = vld [vmem:[#allocation5 + $0x58] sm:$0xff]
        %v228 = vld [vmem:[#allocation5 + $0x60] sm:$0xff]
        %v229 = vld [vmem:[#allocation5 + $0x68] sm:$0xf]
        %v230 = vld [vmem:[#allocation5 + $0x6c] sm:$0xff]
        %v231 = vld [vmem:[#allocation5 + $0x74] sm:$0xff]
        %v232 = vld [vmem:[#allocation5 + $0x7c] sm:$0xff]
        %v233 = vld [vmem:[#allocation5 + $0x84] sm:$0xff]
        %v234 = vld [vmem:[#allocation5 + $0x8c] sm:$0xf]
        %v235 = vld [vmem:[#allocation5 + $0x90] sm:$0xff]
        %v236 = vld [vmem:[#allocation5 + $0x98] sm:$0xff]
        %v237 = vld [vmem:[#allocation5 + $0xa0] sm:$0xff]
        %v238 = vld [vmem:[#allocation5 + $0xa8] sm:$0xff]
        %v239 = vld [vmem:[#allocation5 + $0xb0] sm:$0xf]
        %v240 = vld [vmem:[#allocation5 + $0xb4] sm:$0xff]
        %v241 = vld [vmem:[#allocation5 + $0xbc] sm:$0xff]
        %v242 = vld [vmem:[#allocation5 + $0xc4] sm:$0xff]
        %v243 = vld [vmem:[#allocation5 + $0xcc] sm:$0xff]
        %v244 = vld [vmem:[#allocation5 + $0xd4] sm:$0xf]
        %v245 = vld [vmem:[#allocation5 + $0xd8] sm:$0xff]
        %v246 = vld [vmem:[#allocation5 + $0xe0] sm:$0xff]
        %v247 = vld [vmem:[#allocation5 + $0xe8] sm:$0xff]
        %v248 = vld [vmem:[#allocation5 + $0xf0] sm:$0xff]
        %v249 = vld [vmem:[#allocation5 + $0xf8] sm:$0xf]
        %v250 = vld [vmem:[#allocation5 + $0xfc] sm:$0xff]
        %v251 = vld [vmem:[#allocation5 + $0x104] sm:$0xff]
        %v252 = vld [vmem:[#allocation5 + $0x10c] sm:$0xff]
        %v253 = vld [vmem:[#allocation5 + $0x114] sm:$0xff]
        %v254 = vld [vmem:[#allocation5 + $0x11c] sm:$0xf]
        %v255 = vld [vmem:[#allocation5 + $0x120] sm:$0xff]
        %v256 = vld [vmem:[#allocation5 + $0x128] sm:$0xff]
        %v257 = vld [vmem:[#allocation5 + $0x130] sm:$0xff]
        %v258 = vld [vmem:[#allocation5 + $0x138] sm:$0xff]
        %v259 = vld [vmem:[#allocation5 + $0x140] sm:$0xf]
        %v260 = vld [vmem:[#allocation5 + $0x144] sm:$0xff]
        %v261 = vld [vmem:[#allocation5 + $0x14c] sm:$0xff]
        %v262 = vld [vmem:[#allocation5 + $0x154] sm:$0xff]
        %v263 = vld [vmem:[#allocation5 + $0x15c] sm:$0xff]
        %v264 = vld [vmem:[#allocation5 + $0x164] sm:$0xf]
        %v265 = vld [vmem:[#allocation5 + $0x168] sm:$0xff]
        %v266 = vld [vmem:[#allocation5 + $0x170] sm:$0xff]
        %v267 = vld [vmem:[#allocation5 + $0x178] sm:$0xff]
        %v268 = vld [vmem:[#allocation5 + $0x180] sm:$0xff]
        %v269 = vld [vmem:[#allocation5 + $0x188] sm:$0xf]
        %v270 = vld [vmem:[#allocation5 + $0x18c] sm:$0xff]
        %v271 = vld [vmem:[#allocation5 + $0x194] sm:$0xff]
        %v272 = vld [vmem:[#allocation5 + $0x19c] sm:$0xff]
        %v273 = vld [vmem:[#allocation5 + $0x1a4] sm:$0xff]
        %v274 = vld [vmem:[#allocation5 + $0x1ac] sm:$0xf]
        %v275 = vld [vmem:[#allocation5 + $0x1b0] sm:$0xff]
        %v276 = vld [vmem:[#allocation5 + $0x1b8] sm:$0xff]
        %v277 = vld [vmem:[#allocation5 + $0x1c0] sm:$0xff]
        %v278 = vld [vmem:[#allocation5 + $0x1c8] sm:$0xff]
        %v279 = vld [vmem:[#allocation5 + $0x1d0] sm:$0xf]
        %v280 = vld [vmem:[#allocation5 + $0x1d4] sm:$0xff]
        %v281 = vld [vmem:[#allocation5 + $0x1dc] sm:$0xff]
        %v282 = vld [vmem:[#allocation5 + $0x1e4] sm:$0xff]
        %v283 = vld [vmem:[#allocation5 + $0x1ec] sm:$0xff]
        %v284 = vld [vmem:[#allocation5 + $0x1f4] sm:$0xf]
        %v285 = vld [vmem:[#allocation5 + $0x1f8] sm:$0xff]
        %v286 = vld [vmem:[#allocation5 + $0x200] sm:$0xff]
        %v287 = vld [vmem:[#allocation5 + $0x208] sm:$0xff]
        %v288 = vld [vmem:[#allocation5 + $0x210] sm:$0xff]
        %v289 = vld [vmem:[#allocation5 + $0x218] sm:$0xf]
        %v290 = vld [vmem:[#allocation5 + $0x21c] sm:$0xff]
        %v291 = vld [vmem:[#allocation5 + $0x224] sm:$0xff]
        %v292 = vld [vmem:[#allocation5 + $0x22c] sm:$0xff]
        %v293 = vld [vmem:[#allocation5 + $0x234] sm:$0xff]
        %v294 = vld [vmem:[#allocation5 + $0x23c] sm:$0xf]
        %v295 = vld [vmem:[#allocation5 + $0x240] sm:$0xff]
        %v296 = vld [vmem:[#allocation5 + $0x248] sm:$0xff]
        %v297 = vld [vmem:[#allocation5 + $0x250] sm:$0xff]
        %v298 = vld [vmem:[#allocation5 + $0x258] sm:$0xff]
        %v299 = vld [vmem:[#allocation5 + $0x260] sm:$0xf]
        %v300 = vld [vmem:[#allocation5 + $0x264] sm:$0xff]
        %v301 = vld [vmem:[#allocation5 + $0x26c] sm:$0xff]
        %v302 = vld [vmem:[#allocation5 + $0x274] sm:$0xff]
        %v303 = vld [vmem:[#allocation5 + $0x27c] sm:$0xff]
        %v304 = vld [vmem:[#allocation5 + $0x284] sm:$0xf]
        %v305 = vld [vmem:[#allocation5 + $0x288] sm:$0xff]
        %v306 = vld [vmem:[#allocation5 + $0x290] sm:$0xff]
        %v307 = vld [vmem:[#allocation5 + $0x298] sm:$0xff]
        %v308 = vld [vmem:[#allocation5 + $0x2a0] sm:$0xff]
        %v309 = vld [vmem:[#allocation5 + $0x2a8] sm:$0xf]
        %v310 = vld [vmem:[#allocation5 + $0x2ac] sm:$0xff]
        %v311 = vld [vmem:[#allocation5 + $0x2b4] sm:$0xff]
        %v312 = vld [vmem:[#allocation5 + $0x2bc] sm:$0xff]
        %v313 = vld [vmem:[#allocation5 + $0x2c4] sm:$0xff]
        %v314 = vld [vmem:[#allocation5 + $0x2cc] sm:$0xf]
        %v315 = vld [vmem:[#allocation5 + $0x2d0] sm:$0xff]
        %v316 = vld [vmem:[#allocation5 + $0x2d8] sm:$0xff]
        %v317 = vld [vmem:[#allocation5 + $0x2e0] sm:$0xff]
        %v318 = vld [vmem:[#allocation5 + $0x2e8] sm:$0xff]
        %v319 = vld [vmem:[#allocation5 + $0x2f0] sm:$0xf]
        %v320 = vld [vmem:[#allocation5 + $0x2f4] sm:$0xff]
        %v321 = vld [vmem:[#allocation5 + $0x2fc] sm:$0xff]
        %v322 = vld [vmem:[#allocation5 + $0x304] sm:$0xff]
        %v323 = vld [vmem:[#allocation5 + $0x30c] sm:$0xff]
        %v324 = vld [vmem:[#allocation5 + $0x314] sm:$0xf]
        %v325 = vld [vmem:[#allocation5 + $0x318] sm:$0xff]
        %v326 = vld [vmem:[#allocation5 + $0x320] sm:$0xff]
        %v327 = vld [vmem:[#allocation5 + $0x328] sm:$0xff]
        %v328 = vld [vmem:[#allocation5 + $0x330] sm:$0xff]
        %v329 = vld [vmem:[#allocation5 + $0x338] sm:$0xf]
        %v330 = vld [vmem:[#allocation5 + $0x33c] sm:$0xff]
        %v331 = vld [vmem:[#allocation5 + $0x344] sm:$0xff]
        %v332 = vld [vmem:[#allocation5 + $0x34c] sm:$0xff]
        %v333 = vld [vmem:[#allocation5 + $0x354] sm:$0xff]
        %v334 = vld [vmem:[#allocation5 + $0x35c] sm:$0xf]
        %v335 = vld [vmem:[#allocation5 + $0x360] sm:$0xff]
        %v336 = vld [vmem:[#allocation5 + $0x368] sm:$0xff]
        %v337 = vld [vmem:[#allocation5 + $0x370] sm:$0xff]
        %v338 = vld [vmem:[#allocation5 + $0x378] sm:$0xff]
        %v339 = vld [vmem:[#allocation5 + $0x380] sm:$0xf]
        %v340 = vld [vmem:[#allocation5 + $0x384] sm:$0xff]
        %v341 = vld [vmem:[#allocation5 + $0x38c] sm:$0xff]
        %v342 = vld [vmem:[#allocation5 + $0x394] sm:$0xff]
        %v343 = vld [vmem:[#allocation5 + $0x39c] sm:$0xff]
        %v344 = vld [vmem:[#allocation5 + $0x3a4] sm:$0xf]
        %v345 = vld [vmem:[#allocation5 + $0x3a8] sm:$0xff]
        %v346 = vld [vmem:[#allocation5 + $0x3b0] sm:$0xff]
        %v347 = vld [vmem:[#allocation5 + $0x3b8] sm:$0xff]
        %v348 = vld [vmem:[#allocation5 + $0x3c0] sm:$0xff]
        %v349 = vld [vmem:[#allocation5 + $0x3c8] sm:$0xf]
        %v350 = vld [vmem:[#allocation5 + $0x3cc] sm:$0xff]
        %v351 = vld [vmem:[#allocation5 + $0x3d4] sm:$0xff]
        %v352 = vld [vmem:[#allocation5 + $0x3dc] sm:$0xff]
        %v353 = vld [vmem:[#allocation5 + $0x3e4] sm:$0xff]
        %v354 = vld [vmem:[#allocation5 + $0x3ec] sm:$0xf]
        %v355 = vld [vmem:[#allocation5 + $0x3f0] sm:$0xff]
        %v356 = vld [vmem:[#allocation5 + $0x3f8] sm:$0xff]
        %v357 = vld [vmem:[#allocation5 + $0x400] sm:$0xff]
        %v358 = vld [vmem:[#allocation5 + $0x408] sm:$0xff]
        %v359 = vld [vmem:[#allocation5 + $0x410] sm:$0xf]
        %v360 = vld [vmem:[#allocation5 + $0x414] sm:$0xff]
        %v361 = vld [vmem:[#allocation5 + $0x41c] sm:$0xff]
        %v362 = vld [vmem:[#allocation5 + $0x424] sm:$0xff]
        %v363 = vld [vmem:[#allocation5 + $0x42c] sm:$0xff]
        %v364 = vld [vmem:[#allocation5 + $0x434] sm:$0xf]
        %v365 = vld [vmem:[#allocation5 + $0x438] sm:$0xff]
        %v366 = vld [vmem:[#allocation5 + $0x440] sm:$0xff]
        %v367 = vld [vmem:[#allocation5 + $0x448] sm:$0xff]
        %v368 = vld [vmem:[#allocation5 + $0x450] sm:$0xff]
        %v369 = vld [vmem:[#allocation5 + $0x458] sm:$0xf]
        %v370 = vld [vmem:[#allocation5 + $0x45c] sm:$0xff]
        %v371 = vld [vmem:[#allocation5 + $0x464] sm:$0xff]
        %v372 = vld [vmem:[#allocation5 + $0x46c] sm:$0xff]
        %v373 = vld [vmem:[#allocation5 + $0x474] sm:$0xff]
        %v374 = vld [vmem:[#allocation5 + $0x47c] sm:$0xf]
        %v375 = vld [vmem:[#allocation5 + $0x480] sm:$0xff]
        %v376 = vld [vmem:[#allocation5 + $0x488] sm:$0xff]
        %v377 = vld [vmem:[#allocation5 + $0x490] sm:$0xff]
        %v378 = vld [vmem:[#allocation5 + $0x498] sm:$0xff]
        %v379 = vld [vmem:[#allocation5 + $0x4a0] sm:$0xf]
        %v380 = vld [vmem:[#allocation5 + $0x4a4] sm:$0xff]
        %v381 = vld [vmem:[#allocation5 + $0x4ac] sm:$0xff]
        %v382 = vld [vmem:[#allocation5 + $0x4b4] sm:$0xff]
        %v383 = vld [vmem:[#allocation5 + $0x4bc] sm:$0xff]
        %v384 = vld [vmem:[#allocation5 + $0x4c4] sm:$0xf]
        %v385 = vld [vmem:[#allocation5 + $0x4c8] sm:$0xff]
        %v386 = vld [vmem:[#allocation5 + $0x4d0] sm:$0xff]
        %v387 = vld [vmem:[#allocation5 + $0x4d8] sm:$0xff]
        %v388 = vld [vmem:[#allocation5 + $0x4e0] sm:$0xff]
        %v389 = vld [vmem:[#allocation5 + $0x4e8] sm:$0xf]
        %v390 = vld [vmem:[#allocation5 + $0x4ec] sm:$0xff]
        %v391 = vld [vmem:[#allocation5 + $0x4f4] sm:$0xff]
        %v392 = vld [vmem:[#allocation5 + $0x4fc] sm:$0xff]
        %v393 = vld [vmem:[#allocation5 + $0x504] sm:$0xff]
        %v394 = vld [vmem:[#allocation5 + $0x50c] sm:$0xf]
        %v395 = vld [vmem:[#allocation5 + $0x510] sm:$0xff]
        %v396 = vld [vmem:[#allocation5 + $0x518] sm:$0xff]
        %v397 = vld [vmem:[#allocation5 + $0x520] sm:$0xff]
        %v398 = vld [vmem:[#allocation5 + $0x528] sm:$0xff]
        %v399 = vld [vmem:[#allocation5 + $0x530] sm:$0xf]
        %v400 = vld [vmem:[#allocation5 + $0x534] sm:$0xff]
        %v401 = vld [vmem:[#allocation5 + $0x53c] sm:$0xff]
        %v402 = vld [vmem:[#allocation5 + $0x544] sm:$0xff]
        %v403 = vld [vmem:[#allocation5 + $0x54c] sm:$0xff]
        %v404 = vld [vmem:[#allocation5 + $0x554] sm:$0xf]
        %v405 = vld [vmem:[#allocation5 + $0x558] sm:$0xff]
        %v406 = vld [vmem:[#allocation5 + $0x560] sm:$0xff]
        %v407 = vld [vmem:[#allocation5 + $0x568] sm:$0xff]
        %v408 = vld [vmem:[#allocation5 + $0x570] sm:$0xff]
        %v409 = vld [vmem:[#allocation5 + $0x578] sm:$0xf]
        %v410 = vld [vmem:[#allocation5 + $0x57c] sm:$0xff]
        %v411 = vld [vmem:[#allocation5 + $0x584] sm:$0xff]
        %v412 = vld [vmem:[#allocation5 + $0x58c] sm:$0xff]
        %v413 = vld [vmem:[#allocation5 + $0x594] sm:$0xff]
        %v414 = vld [vmem:[#allocation5 + $0x59c] sm:$0xf]
        %v415 = vld [vmem:[#allocation5 + $0x5a0] sm:$0xff]
        %v416 = vld [vmem:[#allocation5 + $0x5a8] sm:$0xff]
        %v417 = vld [vmem:[#allocation5 + $0x5b0] sm:$0xff]
        %v418 = vld [vmem:[#allocation5 + $0x5b8] sm:$0xff]
        %v419 = vld [vmem:[#allocation5 + $0x5c0] sm:$0xf]
        %v420 = vld [vmem:[#allocation5 + $0x5c4] sm:$0xff]
        %v421 = vld [vmem:[#allocation5 + $0x5cc] sm:$0xff]
        %v422 = vld [vmem:[#allocation5 + $0x5d4] sm:$0xff]
        %v423 = vld [vmem:[#allocation5 + $0x5dc] sm:$0xff]
        %v424 = vld [vmem:[#allocation5 + $0x5e4] sm:$0xf]
        %v425 = vld [vmem:[#allocation5 + $0x5e8] sm:$0xff]
        %v426 = vld [vmem:[#allocation5 + $0x5f0] sm:$0xff]
        %v427 = vld [vmem:[#allocation5 + $0x5f8] sm:$0xff]
        %v428 = vld [vmem:[#allocation5 + $0x600] sm:$0xff]
        %v429 = vld [vmem:[#allocation5 + $0x608] sm:$0xf]
        %v430 = vld [vmem:[#allocation5 + $0x60c] sm:$0xff]
        %v431 = vld [vmem:[#allocation5 + $0x614] sm:$0xff]
        %v432 = vld [vmem:[#allocation5 + $0x61c] sm:$0xff]
        %v433 = vld [vmem:[#allocation5 + $0x624] sm:$0xff]
        %v434 = vld [vmem:[#allocation5 + $0x62c] sm:$0xf]
        %v435 = vld [vmem:[#allocation5 + $0x630] sm:$0xff]
        %v436 = vld [vmem:[#allocation5 + $0x638] sm:$0xff]
        %v437 = vld [vmem:[#allocation5 + $0x640] sm:$0xff]
        %v438 = vld [vmem:[#allocation5 + $0x648] sm:$0xff]
        %v439 = vld [vmem:[#allocation5 + $0x650] sm:$0xf]
        %v440 = vld [vmem:[#allocation5 + $0x654] sm:$0xff]
        %v441 = vld [vmem:[#allocation5 + $0x65c] sm:$0xff]
        %v442 = vld [vmem:[#allocation5 + $0x664] sm:$0xff]
        %v443 = vld [vmem:[#allocation5 + $0x66c] sm:$0xff]
        %v444 = vld [vmem:[#allocation5 + $0x674] sm:$0xf]
        %v445 = vld [vmem:[#allocation5 + $0x678] sm:$0xff]
        %v446 = vld [vmem:[#allocation5 + $0x680] sm:$0xff]
        %v447 = vld [vmem:[#allocation5 + $0x688] sm:$0xff]
        %v448 = vld [vmem:[#allocation5 + $0x690] sm:$0xff]
        %v449 = vld [vmem:[#allocation5 + $0x698] sm:$0xf]
        %v450 = vld [vmem:[#allocation5 + $0x69c] sm:$0xff]
        %v451 = vld [vmem:[#allocation5 + $0x6a4] sm:$0xff]
        %v452 = vld [vmem:[#allocation5 + $0x6ac] sm:$0xff]
        %v453 = vld [vmem:[#allocation5 + $0x6b4] sm:$0xff]
        %v454 = vld [vmem:[#allocation5 + $0x6bc] sm:$0xf]
        %v471 = vunpack.c.l.b16 %v199
        %v472 = vunpack.c.h.b16 %v199
        %v473 = vunpack.c.l.b16 %v200
        %v474 = vunpack.c.l.b16 %v201
        %v475 = vunpack.c.h.b16 %v201
        %v476 = vunpack.c.l.b16 %v202
        %v477 = vunpack.c.l.b16 %v203
        %v478 = vunpack.c.h.b16 %v203
        %v479 = vunpack.c.l.b16 %v204
        %v480 = vunpack.c.l.b16 %v205
        %v481 = vunpack.c.h.b16 %v205
        %v482 = vunpack.c.l.b16 %v206
        %v483 = vunpack.c.l.b16 %v207
        %v484 = vunpack.c.h.b16 %v207
        %v485 = vunpack.c.l.b16 %v208
        %v486 = vunpack.c.l.b16 %v209
        %v487 = vunpack.c.h.b16 %v209
        %v488 = vunpack.c.l.b16 %v210
        %v489 = vunpack.c.l.b16 %v211
        %v490 = vunpack.c.h.b16 %v211
        %v491 = vunpack.c.l.b16 %v212
        %v492 = vunpack.c.l.b16 %v213
        %v493 = vunpack.c.h.b16 %v213
        %v494 = vunpack.c.l.b16 %v214
        %v495 = vpack.c.b16 %v474, %v471
        %v496 = vpack.c.b16 %v475, %v472
        %v497 = vpack.c.b16 %v476, %v473
        %v498 = vpack.c.b16 %v480, %v477
        %v499 = vpack.c.b16 %v481, %v478
        %v500 = vpack.c.b16 %v482, %v479
        %v501 = vpack.c.b16 %v486, %v483
        %v502 = vpack.c.b16 %v487, %v484
        %v503 = vpack.c.b16 %v488, %v485
        %v504 = vpack.c.b16 %v492, %v489
        %v505 = vpack.c.b16 %v493, %v490
        %v506 = vpack.c.b16 %v494, %v491
        %v759 = vunpack.c.l.b16 %v215
        %v760 = vunpack.c.h.b16 %v215
        %v761 = vunpack.c.l.b16 %v216
        %v762 = vunpack.c.h.b16 %v216
        %v763 = vunpack.c.l.b16 %v217
        %v764 = vunpack.c.h.b16 %v217
        %v765 = vunpack.c.l.b16 %v218
        %v766 = vunpack.c.h.b16 %v218
        %v767 = vunpack.c.l.b16 %v219
        %v768 = vunpack.c.l.b16 %v220
        %v769 = vunpack.c.h.b16 %v220
        %v770 = vunpack.c.l.b16 %v221
        %v771 = vunpack.c.h.b16 %v221
        %v772 = vunpack.c.l.b16 %v222
        %v773 = vunpack.c.h.b16 %v222
        %v774 = vunpack.c.l.b16 %v223
        %v775 = vunpack.c.h.b16 %v223
        %v776 = vunpack.c.l.b16 %v224
        %v777 = vunpack.c.l.b16 %v225
        %v778 = vunpack.c.h.b16 %v225
        %v779 = vunpack.c.l.b16 %v226
        %v780 = vunpack.c.h.b16 %v226
        %v781 = vunpack.c.l.b16 %v227
        %v782 = vunpack.c.h.b16 %v227
        %v783 = vunpack.c.l.b16 %v228
        %v784 = vunpack.c.h.b16 %v228
        %v785 = vunpack.c.l.b16 %v229
        %v786 = vunpack.c.l.b16 %v230
        %v787 = vunpack.c.h.b16 %v230
        %v788 = vunpack.c.l.b16 %v231
        %v789 = vunpack.c.h.b16 %v231
        %v790 = vunpack.c.l.b16 %v232
        %v791 = vunpack.c.h.b16 %v232
        %v792 = vunpack.c.l.b16 %v233
        %v793 = vunpack.c.h.b16 %v233
        %v794 = vunpack.c.l.b16 %v234
        %v795 = vunpack.c.l.b16 %v235
        %v796 = vunpack.c.h.b16 %v235
        %v797 = vunpack.c.l.b16 %v236
        %v798 = vunpack.c.h.b16 %v236
        %v799 = vunpack.c.l.b16 %v237
        %v800 = vunpack.c.h.b16 %v237
        %v801 = vunpack.c.l.b16 %v238
        %v802 = vunpack.c.h.b16 %v238
        %v803 = vunpack.c.l.b16 %v239
        %v804 = vunpack.c.l.b16 %v240
        %v805 = vunpack.c.h.b16 %v240
        %v806 = vunpack.c.l.b16 %v241
        %v807 = vunpack.c.h.b16 %v241
        %v808 = vunpack.c.l.b16 %v242
        %v809 = vunpack.c.h.b16 %v242
        %v810 = vunpack.c.l.b16 %v243
        %v811 = vunpack.c.h.b16 %v243
        %v812 = vunpack.c.l.b16 %v244
        %v813 = vunpack.c.l.b16 %v245
        %v814 = vunpack.c.h.b16 %v245
        %v815 = vunpack.c.l.b16 %v246
        %v816 = vunpack.c.h.b16 %v246
        %v817 = vunpack.c.l.b16 %v247
        %v818 = vunpack.c.h.b16 %v247
        %v819 = vunpack.c.l.b16 %v248
        %v820 = vunpack.c.h.b16 %v248
        %v821 = vunpack.c.l.b16 %v249
        %v822 = vunpack.c.l.b16 %v250
        %v823 = vunpack.c.h.b16 %v250
        %v824 = vunpack.c.l.b16 %v251
        %v825 = vunpack.c.h.b16 %v251
        %v826 = vunpack.c.l.b16 %v252
        %v827 = vunpack.c.h.b16 %v252
        %v828 = vunpack.c.l.b16 %v253
        %v829 = vunpack.c.h.b16 %v253
        %v830 = vunpack.c.l.b16 %v254
        %v831 = vunpack.c.l.b16 %v255
        %v832 = vunpack.c.h.b16 %v255
        %v833 = vunpack.c.l.b16 %v256
        %v834 = vunpack.c.h.b16 %v256
        %v835 = vunpack.c.l.b16 %v257
        %v836 = vunpack.c.h.b16 %v257
        %v837 = vunpack.c.l.b16 %v258
        %v838 = vunpack.c.h.b16 %v258
        %v839 = vunpack.c.l.b16 %v259
        %v840 = vunpack.c.l.b16 %v260
        %v841 = vunpack.c.h.b16 %v260
        %v842 = vunpack.c.l.b16 %v261
        %v843 = vunpack.c.h.b16 %v261
        %v844 = vunpack.c.l.b16 %v262
        %v845 = vunpack.c.h.b16 %v262
        %v846 = vunpack.c.l.b16 %v263
        %v847 = vunpack.c.h.b16 %v263
        %v848 = vunpack.c.l.b16 %v264
        %v849 = vunpack.c.l.b16 %v265
        %v850 = vunpack.c.h.b16 %v265
        %v851 = vunpack.c.l.b16 %v266
        %v852 = vunpack.c.h.b16 %v266
        %v853 = vunpack.c.l.b16 %v267
        %v854 = vunpack.c.h.b16 %v267
        %v855 = vunpack.c.l.b16 %v268
        %v856 = vunpack.c.h.b16 %v268
        %v857 = vunpack.c.l.b16 %v269
        %v858 = vunpack.c.l.b16 %v270
        %v859 = vunpack.c.h.b16 %v270
        %v860 = vunpack.c.l.b16 %v271
        %v861 = vunpack.c.h.b16 %v271
        %v862 = vunpack.c.l.b16 %v272
        %v863 = vunpack.c.h.b16 %v272
        %v864 = vunpack.c.l.b16 %v273
        %v865 = vunpack.c.h.b16 %v273
        %v866 = vunpack.c.l.b16 %v274
        %v867 = vunpack.c.l.b16 %v275
        %v868 = vunpack.c.h.b16 %v275
        %v869 = vunpack.c.l.b16 %v276
        %v870 = vunpack.c.h.b16 %v276
        %v871 = vunpack.c.l.b16 %v277
        %v872 = vunpack.c.h.b16 %v277
        %v873 = vunpack.c.l.b16 %v278
        %v874 = vunpack.c.h.b16 %v278
        %v875 = vunpack.c.l.b16 %v279
        %v876 = vunpack.c.l.b16 %v280
        %v877 = vunpack.c.h.b16 %v280
        %v878 = vunpack.c.l.b16 %v281
        %v879 = vunpack.c.h.b16 %v281
        %v880 = vunpack.c.l.b16 %v282
        %v881 = vunpack.c.h.b16 %v282
        %v882 = vunpack.c.l.b16 %v283
        %v883 = vunpack.c.h.b16 %v283
        %v884 = vunpack.c.l.b16 %v284
        %v885 = vunpack.c.l.b16 %v285
        %v886 = vunpack.c.h.b16 %v285
        %v887 = vunpack.c.l.b16 %v286
        %v888 = vunpack.c.h.b16 %v286
        %v889 = vunpack.c.l.b16 %v287
        %v890 = vunpack.c.h.b16 %v287
        %v891 = vunpack.c.l.b16 %v288
        %v892 = vunpack.c.h.b16 %v288
        %v893 = vunpack.c.l.b16 %v289
        %v894 = vunpack.c.l.b16 %v290
        %v895 = vunpack.c.h.b16 %v290
        %v896 = vunpack.c.l.b16 %v291
        %v897 = vunpack.c.h.b16 %v291
        %v898 = vunpack.c.l.b16 %v292
        %v899 = vunpack.c.h.b16 %v292
        %v900 = vunpack.c.l.b16 %v293
        %v901 = vunpack.c.h.b16 %v293
        %v902 = vunpack.c.l.b16 %v294
        %v903 = vunpack.c.l.b16 %v295
        %v904 = vunpack.c.h.b16 %v295
        %v905 = vunpack.c.l.b16 %v296
        %v906 = vunpack.c.h.b16 %v296
        %v907 = vunpack.c.l.b16 %v297
        %v908 = vunpack.c.h.b16 %v297
        %v909 = vunpack.c.l.b16 %v298
        %v910 = vunpack.c.h.b16 %v298
        %v911 = vunpack.c.l.b16 %v299
        %v912 = vunpack.c.l.b16 %v300
        %v913 = vunpack.c.h.b16 %v300
        %v914 = vunpack.c.l.b16 %v301
        %v915 = vunpack.c.h.b16 %v301
        %v916 = vunpack.c.l.b16 %v302
        %v917 = vunpack.c.h.b16 %v302
        %v918 = vunpack.c.l.b16 %v303
        %v919 = vunpack.c.h.b16 %v303
        %v920 = vunpack.c.l.b16 %v304
        %v921 = vunpack.c.l.b16 %v305
        %v922 = vunpack.c.h.b16 %v305
        %v923 = vunpack.c.l.b16 %v306
        %v924 = vunpack.c.h.b16 %v306
        %v925 = vunpack.c.l.b16 %v307
        %v926 = vunpack.c.h.b16 %v307
        %v927 = vunpack.c.l.b16 %v308
        %v928 = vunpack.c.h.b16 %v308
        %v929 = vunpack.c.l.b16 %v309
        %v930 = vunpack.c.l.b16 %v310
        %v931 = vunpack.c.h.b16 %v310
        %v932 = vunpack.c.l.b16 %v311
        %v933 = vunpack.c.h.b16 %v311
        %v934 = vunpack.c.l.b16 %v312
        %v935 = vunpack.c.h.b16 %v312
        %v936 = vunpack.c.l.b16 %v313
        %v937 = vunpack.c.h.b16 %v313
        %v938 = vunpack.c.l.b16 %v314
        %v939 = vunpack.c.l.b16 %v315
        %v940 = vunpack.c.h.b16 %v315
        %v941 = vunpack.c.l.b16 %v316
        %v942 = vunpack.c.h.b16 %v316
        %v943 = vunpack.c.l.b16 %v317
        %v944 = vunpack.c.h.b16 %v317
        %v945 = vunpack.c.l.b16 %v318
        %v946 = vunpack.c.h.b16 %v318
        %v947 = vunpack.c.l.b16 %v319
        %v948 = vunpack.c.l.b16 %v320
        %v949 = vunpack.c.h.b16 %v320
        %v950 = vunpack.c.l.b16 %v321
        %v951 = vunpack.c.h.b16 %v321
        %v952 = vunpack.c.l.b16 %v322
        %v953 = vunpack.c.h.b16 %v322
        %v954 = vunpack.c.l.b16 %v323
        %v955 = vunpack.c.h.b16 %v323
        %v956 = vunpack.c.l.b16 %v324
        %v957 = vunpack.c.l.b16 %v325
        %v958 = vunpack.c.h.b16 %v325
        %v959 = vunpack.c.l.b16 %v326
        %v960 = vunpack.c.h.b16 %v326
        %v961 = vunpack.c.l.b16 %v327
        %v962 = vunpack.c.h.b16 %v327
        %v963 = vunpack.c.l.b16 %v328
        %v964 = vunpack.c.h.b16 %v328
        %v965 = vunpack.c.l.b16 %v329
        %v966 = vunpack.c.l.b16 %v330
        %v967 = vunpack.c.h.b16 %v330
        %v968 = vunpack.c.l.b16 %v331
        %v969 = vunpack.c.h.b16 %v331
        %v970 = vunpack.c.l.b16 %v332
        %v971 = vunpack.c.h.b16 %v332
        %v972 = vunpack.c.l.b16 %v333
        %v973 = vunpack.c.h.b16 %v333
        %v974 = vunpack.c.l.b16 %v334
        %v975 = vunpack.c.l.b16 %v335
        %v976 = vunpack.c.h.b16 %v335
        %v977 = vunpack.c.l.b16 %v336
        %v978 = vunpack.c.h.b16 %v336
        %v979 = vunpack.c.l.b16 %v337
        %v980 = vunpack.c.h.b16 %v337
        %v981 = vunpack.c.l.b16 %v338
        %v982 = vunpack.c.h.b16 %v338
        %v983 = vunpack.c.l.b16 %v339
        %v984 = vunpack.c.l.b16 %v340
        %v985 = vunpack.c.h.b16 %v340
        %v986 = vunpack.c.l.b16 %v341
        %v987 = vunpack.c.h.b16 %v341
        %v988 = vunpack.c.l.b16 %v342
        %v989 = vunpack.c.h.b16 %v342
        %v990 = vunpack.c.l.b16 %v343
        %v991 = vunpack.c.h.b16 %v343
        %v992 = vunpack.c.l.b16 %v344
        %v993 = vunpack.c.l.b16 %v345
        %v994 = vunpack.c.h.b16 %v345
        %v995 = vunpack.c.l.b16 %v346
        %v996 = vunpack.c.h.b16 %v346
        %v997 = vunpack.c.l.b16 %v347
        %v998 = vunpack.c.h.b16 %v347
        %v999 = vunpack.c.l.b16 %v348
        %v1000 = vunpack.c.h.b16 %v348
        %v1001 = vunpack.c.l.b16 %v349
        %v1002 = vunpack.c.l.b16 %v350
        %v1003 = vunpack.c.h.b16 %v350
        %v1004 = vunpack.c.l.b16 %v351
        %v1005 = vunpack.c.h.b16 %v351
        %v1006 = vunpack.c.l.b16 %v352
        %v1007 = vunpack.c.h.b16 %v352
        %v1008 = vunpack.c.l.b16 %v353
        %v1009 = vunpack.c.h.b16 %v353
        %v1010 = vunpack.c.l.b16 %v354
        %v1011 = vunpack.c.l.b16 %v355
        %v1012 = vunpack.c.h.b16 %v355
        %v1013 = vunpack.c.l.b16 %v356
        %v1014 = vunpack.c.h.b16 %v356
        %v1015 = vunpack.c.l.b16 %v357
        %v1016 = vunpack.c.h.b16 %v357
        %v1017 = vunpack.c.l.b16 %v358
        %v1018 = vunpack.c.h.b16 %v358
        %v1019 = vunpack.c.l.b16 %v359
        %v1020 = vunpack.c.l.b16 %v360
        %v1021 = vunpack.c.h.b16 %v360
        %v1022 = vunpack.c.l.b16 %v361
        %v1023 = vunpack.c.h.b16 %v361
        %v1024 = vunpack.c.l.b16 %v362
        %v1025 = vunpack.c.h.b16 %v362
        %v1026 = vunpack.c.l.b16 %v363
        %v1027 = vunpack.c.h.b16 %v363
        %v1028 = vunpack.c.l.b16 %v364
        %v1029 = vunpack.c.l.b16 %v365
        %v1030 = vunpack.c.h.b16 %v365
        %v1031 = vunpack.c.l.b16 %v366
        %v1032 = vunpack.c.h.b16 %v366
        %v1033 = vunpack.c.l.b16 %v367
        %v1034 = vunpack.c.h.b16 %v367
        %v1035 = vunpack.c.l.b16 %v368
        %v1036 = vunpack.c.h.b16 %v368
        %v1037 = vunpack.c.l.b16 %v369
        %v1038 = vunpack.c.l.b16 %v370
        %v1039 = vunpack.c.h.b16 %v370
        %v1040 = vunpack.c.l.b16 %v371
        %v1041 = vunpack.c.h.b16 %v371
        %v1042 = vunpack.c.l.b16 %v372
        %v1043 = vunpack.c.h.b16 %v372
        %v1044 = vunpack.c.l.b16 %v373
        %v1045 = vunpack.c.h.b16 %v373
        %v1046 = vunpack.c.l.b16 %v374
        %v1047 = vunpack.c.l.b16 %v375
        %v1048 = vunpack.c.h.b16 %v375
        %v1049 = vunpack.c.l.b16 %v376
        %v1050 = vunpack.c.h.b16 %v376
        %v1051 = vunpack.c.l.b16 %v377
        %v1052 = vunpack.c.h.b16 %v377
        %v1053 = vunpack.c.l.b16 %v378
        %v1054 = vunpack.c.h.b16 %v378
        %v1055 = vunpack.c.l.b16 %v379
        %v1056 = vunpack.c.l.b16 %v380
        %v1057 = vunpack.c.h.b16 %v380
        %v1058 = vunpack.c.l.b16 %v381
        %v1059 = vunpack.c.h.b16 %v381
        %v1060 = vunpack.c.l.b16 %v382
        %v1061 = vunpack.c.h.b16 %v382
        %v1062 = vunpack.c.l.b16 %v383
        %v1063 = vunpack.c.h.b16 %v383
        %v1064 = vunpack.c.l.b16 %v384
        %v1065 = vunpack.c.l.b16 %v385
        %v1066 = vunpack.c.h.b16 %v385
        %v1067 = vunpack.c.l.b16 %v386
        %v1068 = vunpack.c.h.b16 %v386
        %v1069 = vunpack.c.l.b16 %v387
        %v1070 = vunpack.c.h.b16 %v387
        %v1071 = vunpack.c.l.b16 %v388
        %v1072 = vunpack.c.h.b16 %v388
        %v1073 = vunpack.c.l.b16 %v389
        %v1074 = vunpack.c.l.b16 %v390
        %v1075 = vunpack.c.h.b16 %v390
        %v1076 = vunpack.c.l.b16 %v391
        %v1077 = vunpack.c.h.b16 %v391
        %v1078 = vunpack.c.l.b16 %v392
        %v1079 = vunpack.c.h.b16 %v392
        %v1080 = vunpack.c.l.b16 %v393
        %v1081 = vunpack.c.h.b16 %v393
        %v1082 = vunpack.c.l.b16 %v394
        %v1083 = vunpack.c.l.b16 %v395
        %v1084 = vunpack.c.h.b16 %v395
        %v1085 = vunpack.c.l.b16 %v396
        %v1086 = vunpack.c.h.b16 %v396
        %v1087 = vunpack.c.l.b16 %v397
        %v1088 = vunpack.c.h.b16 %v397
        %v1089 = vunpack.c.l.b16 %v398
        %v1090 = vunpack.c.h.b16 %v398
        %v1091 = vunpack.c.l.b16 %v399
        %v1092 = vunpack.c.l.b16 %v400
        %v1093 = vunpack.c.h.b16 %v400
        %v1094 = vunpack.c.l.b16 %v401
        %v1095 = vunpack.c.h.b16 %v401
        %v1096 = vunpack.c.l.b16 %v402
        %v1097 = vunpack.c.h.b16 %v402
        %v1098 = vunpack.c.l.b16 %v403
        %v1099 = vunpack.c.h.b16 %v403
        %v1100 = vunpack.c.l.b16 %v404
        %v1101 = vunpack.c.l.b16 %v405
        %v1102 = vunpack.c.h.b16 %v405
        %v1103 = vunpack.c.l.b16 %v406
        %v1104 = vunpack.c.h.b16 %v406
        %v1105 = vunpack.c.l.b16 %v407
        %v1106 = vunpack.c.h.b16 %v407
        %v1107 = vunpack.c.l.b16 %v408
        %v1108 = vunpack.c.h.b16 %v408
        %v1109 = vunpack.c.l.b16 %v409
        %v1110 = vunpack.c.l.b16 %v410
        %v1111 = vunpack.c.h.b16 %v410
        %v1112 = vunpack.c.l.b16 %v411
        %v1113 = vunpack.c.h.b16 %v411
        %v1114 = vunpack.c.l.b16 %v412
        %v1115 = vunpack.c.h.b16 %v412
        %v1116 = vunpack.c.l.b16 %v413
        %v1117 = vunpack.c.h.b16 %v413
        %v1118 = vunpack.c.l.b16 %v414
        %v1119 = vunpack.c.l.b16 %v415
        %v1120 = vunpack.c.h.b16 %v415
        %v1121 = vunpack.c.l.b16 %v416
        %v1122 = vunpack.c.h.b16 %v416
        %v1123 = vunpack.c.l.b16 %v417
        %v1124 = vunpack.c.h.b16 %v417
        %v1125 = vunpack.c.l.b16 %v418
        %v1126 = vunpack.c.h.b16 %v418
        %v1127 = vunpack.c.l.b16 %v419
        %v1128 = vunpack.c.l.b16 %v420
        %v1129 = vunpack.c.h.b16 %v420
        %v1130 = vunpack.c.l.b16 %v421
        %v1131 = vunpack.c.h.b16 %v421
        %v1132 = vunpack.c.l.b16 %v422
        %v1133 = vunpack.c.h.b16 %v422
        %v1134 = vunpack.c.l.b16 %v423
        %v1135 = vunpack.c.h.b16 %v423
        %v1136 = vunpack.c.l.b16 %v424
        %v1137 = vunpack.c.l.b16 %v425
        %v1138 = vunpack.c.h.b16 %v425
        %v1139 = vunpack.c.l.b16 %v426
        %v1140 = vunpack.c.h.b16 %v426
        %v1141 = vunpack.c.l.b16 %v427
        %v1142 = vunpack.c.h.b16 %v427
        %v1143 = vunpack.c.l.b16 %v428
        %v1144 = vunpack.c.h.b16 %v428
        %v1145 = vunpack.c.l.b16 %v429
        %v1146 = vunpack.c.l.b16 %v430
        %v1147 = vunpack.c.h.b16 %v430
        %v1148 = vunpack.c.l.b16 %v431
        %v1149 = vunpack.c.h.b16 %v431
        %v1150 = vunpack.c.l.b16 %v432
        %v1151 = vunpack.c.h.b16 %v432
        %v1152 = vunpack.c.l.b16 %v433
        %v1153 = vunpack.c.h.b16 %v433
        %v1154 = vunpack.c.l.b16 %v434
        %v1155 = vunpack.c.l.b16 %v435
        %v1156 = vunpack.c.h.b16 %v435
        %v1157 = vunpack.c.l.b16 %v436
        %v1158 = vunpack.c.h.b16 %v436
        %v1159 = vunpack.c.l.b16 %v437
        %v1160 = vunpack.c.h.b16 %v437
        %v1161 = vunpack.c.l.b16 %v438
        %v1162 = vunpack.c.h.b16 %v438
        %v1163 = vunpack.c.l.b16 %v439
        %v1164 = vunpack.c.l.b16 %v440
        %v1165 = vunpack.c.h.b16 %v440
        %v1166 = vunpack.c.l.b16 %v441
        %v1167 = vunpack.c.h.b16 %v441
        %v1168 = vunpack.c.l.b16 %v442
        %v1169 = vunpack.c.h.b16 %v442
        %v1170 = vunpack.c.l.b16 %v443
        %v1171 = vunpack.c.h.b16 %v443
        %v1172 = vunpack.c.l.b16 %v444
        %v1173 = vunpack.c.l.b16 %v445
        %v1174 = vunpack.c.h.b16 %v445
        %v1175 = vunpack.c.l.b16 %v446
        %v1176 = vunpack.c.h.b16 %v446
        %v1177 = vunpack.c.l.b16 %v447
        %v1178 = vunpack.c.h.b16 %v447
        %v1179 = vunpack.c.l.b16 %v448
        %v1180 = vunpack.c.h.b16 %v448
        %v1181 = vunpack.c.l.b16 %v449
        %v1182 = vunpack.c.l.b16 %v450
        %v1183 = vunpack.c.h.b16 %v450
        %v1184 = vunpack.c.l.b16 %v451
        %v1185 = vunpack.c.h.b16 %v451
        %v1186 = vunpack.c.l.b16 %v452
        %v1187 = vunpack.c.h.b16 %v452
        %v1188 = vunpack.c.l.b16 %v453
        %v1189 = vunpack.c.h.b16 %v453
        %v1190 = vunpack.c.l.b16 %v454
        %v1191 = vpack.c.b16 %v768, %v759
        %v1192 = vpack.c.b16 %v769, %v760
        %v1193 = vpack.c.b16 %v770, %v761
        %v1194 = vpack.c.b16 %v771, %v762
        %v1195 = vpack.c.b16 %v772, %v763
        %v1196 = vpack.c.b16 %v773, %v764
        %v1197 = vpack.c.b16 %v774, %v765
        %v1198 = vpack.c.b16 %v775, %v766
        %v1199 = vpack.c.b16 %v776, %v767
        %v1200 = vpack.c.b16 %v786, %v777
        %v1201 = vpack.c.b16 %v787, %v778
        %v1202 = vpack.c.b16 %v788, %v779
        %v1203 = vpack.c.b16 %v789, %v780
        %v1204 = vpack.c.b16 %v790, %v781
        %v1205 = vpack.c.b16 %v791, %v782
        %v1206 = vpack.c.b16 %v792, %v783
        %v1207 = vpack.c.b16 %v793, %v784
        %v1208 = vpack.c.b16 %v794, %v785
        %v1209 = vpack.c.b16 %v804, %v795
        %v1210 = vpack.c.b16 %v805, %v796
        %v1211 = vpack.c.b16 %v806, %v797
        %v1212 = vpack.c.b16 %v807, %v798
        %v1213 = vpack.c.b16 %v808, %v799
        %v1214 = vpack.c.b16 %v809, %v800
        %v1215 = vpack.c.b16 %v810, %v801
        %v1216 = vpack.c.b16 %v811, %v802
        %v1217 = vpack.c.b16 %v812, %v803
        %v1218 = vpack.c.b16 %v822, %v813
        %v1219 = vpack.c.b16 %v823, %v814
        %v1220 = vpack.c.b16 %v824, %v815
        %v1221 = vpack.c.b16 %v825, %v816
        %v1222 = vpack.c.b16 %v826, %v817
        %v1223 = vpack.c.b16 %v827, %v818
        %v1224 = vpack.c.b16 %v828, %v819
        %v1225 = vpack.c.b16 %v829, %v820
        %v1226 = vpack.c.b16 %v830, %v821
        %v1227 = vpack.c.b16 %v840, %v831
        %v1228 = vpack.c.b16 %v841, %v832
        %v1229 = vpack.c.b16 %v842, %v833
        %v1230 = vpack.c.b16 %v843, %v834
        %v1231 = vpack.c.b16 %v844, %v835
        %v1232 = vpack.c.b16 %v845, %v836
        %v1233 = vpack.c.b16 %v846, %v837
        %v1234 = vpack.c.b16 %v847, %v838
        %v1235 = vpack.c.b16 %v848, %v839
        %v1236 = vpack.c.b16 %v858, %v849
        %v1237 = vpack.c.b16 %v859, %v850
        %v1238 = vpack.c.b16 %v860, %v851
        %v1239 = vpack.c.b16 %v861, %v852
        %v1240 = vpack.c.b16 %v862, %v853
        %v1241 = vpack.c.b16 %v863, %v854
        %v1242 = vpack.c.b16 %v864, %v855
        %v1243 = vpack.c.b16 %v865, %v856
        %v1244 = vpack.c.b16 %v866, %v857
        %v1245 = vpack.c.b16 %v876, %v867
        %v1246 = vpack.c.b16 %v877, %v868
        %v1247 = vpack.c.b16 %v878, %v869
        %v1248 = vpack.c.b16 %v879, %v870
        %v1249 = vpack.c.b16 %v880, %v871
        %v1250 = vpack.c.b16 %v881, %v872
        %v1251 = vpack.c.b16 %v882, %v873
        %v1252 = vpack.c.b16 %v883, %v874
        %v1253 = vpack.c.b16 %v884, %v875
        %v1254 = vpack.c.b16 %v894, %v885
        %v1255 = vpack.c.b16 %v895, %v886
        %v1256 = vpack.c.b16 %v896, %v887
        %v1257 = vpack.c.b16 %v897, %v888
        %v1258 = vpack.c.b16 %v898, %v889
        %v1259 = vpack.c.b16 %v899, %v890
        %v1260 = vpack.c.b16 %v900, %v891
        %v1261 = vpack.c.b16 %v901, %v892
        %v1262 = vpack.c.b16 %v902, %v893
        %v1263 = vpack.c.b16 %v912, %v903
        %v1264 = vpack.c.b16 %v913, %v904
        %v1265 = vpack.c.b16 %v914, %v905
        %v1266 = vpack.c.b16 %v915, %v906
        %v1267 = vpack.c.b16 %v916, %v907
        %v1268 = vpack.c.b16 %v917, %v908
        %v1269 = vpack.c.b16 %v918, %v909
        %v1270 = vpack.c.b16 %v919, %v910
        %v1271 = vpack.c.b16 %v920, %v911
        %v1272 = vpack.c.b16 %v930, %v921
        %v1273 = vpack.c.b16 %v931, %v922
        %v1274 = vpack.c.b16 %v932, %v923
        %v1275 = vpack.c.b16 %v933, %v924
        %v1276 = vpack.c.b16 %v934, %v925
        %v1277 = vpack.c.b16 %v935, %v926
        %v1278 = vpack.c.b16 %v936, %v927
        %v1279 = vpack.c.b16 %v937, %v928
        %v1280 = vpack.c.b16 %v938, %v929
        %v1281 = vpack.c.b16 %v948, %v939
        %v1282 = vpack.c.b16 %v949, %v940
        %v1283 = vpack.c.b16 %v950, %v941
        %v1284 = vpack.c.b16 %v951, %v942
        %v1285 = vpack.c.b16 %v952, %v943
        %v1286 = vpack.c.b16 %v953, %v944
        %v1287 = vpack.c.b16 %v954, %v945
        %v1288 = vpack.c.b16 %v955, %v946
        %v1289 = vpack.c.b16 %v956, %v947
        %v1290 = vpack.c.b16 %v966, %v957
        %v1291 = vpack.c.b16 %v967, %v958
        %v1292 = vpack.c.b16 %v968, %v959
        %v1293 = vpack.c.b16 %v969, %v960
        %v1294 = vpack.c.b16 %v970, %v961
        %v1295 = vpack.c.b16 %v971, %v962
        %v1296 = vpack.c.b16 %v972, %v963
        %v1297 = vpack.c.b16 %v973, %v964
        %v1298 = vpack.c.b16 %v974, %v965
        %v1299 = vpack.c.b16 %v984, %v975
        %v1300 = vpack.c.b16 %v985, %v976
        %v1301 = vpack.c.b16 %v986, %v977
        %v1302 = vpack.c.b16 %v987, %v978
        %v1303 = vpack.c.b16 %v988, %v979
        %v1304 = vpack.c.b16 %v989, %v980
        %v1305 = vpack.c.b16 %v990, %v981
        %v1306 = vpack.c.b16 %v991, %v982
        %v1307 = vpack.c.b16 %v992, %v983
        %v1308 = vpack.c.b16 %v1002, %v993
        %v1309 = vpack.c.b16 %v1003, %v994
        %v1310 = vpack.c.b16 %v1004, %v995
        %v1311 = vpack.c.b16 %v1005, %v996
        %v1312 = vpack.c.b16 %v1006, %v997
        %v1313 = vpack.c.b16 %v1007, %v998
        %v1314 = vpack.c.b16 %v1008, %v999
        %v1315 = vpack.c.b16 %v1009, %v1000
        %v1316 = vpack.c.b16 %v1010, %v1001
        %v1317 = vpack.c.b16 %v1020, %v1011
        %v1318 = vpack.c.b16 %v1021, %v1012
        %v1319 = vpack.c.b16 %v1022, %v1013
        %v1320 = vpack.c.b16 %v1023, %v1014
        %v1321 = vpack.c.b16 %v1024, %v1015
        %v1322 = vpack.c.b16 %v1025, %v1016
        %v1323 = vpack.c.b16 %v1026, %v1017
        %v1324 = vpack.c.b16 %v1027, %v1018
        %v1325 = vpack.c.b16 %v1028, %v1019
        %v1326 = vpack.c.b16 %v1038, %v1029
        %v1327 = vpack.c.b16 %v1039, %v1030
        %v1328 = vpack.c.b16 %v1040, %v1031
        %v1329 = vpack.c.b16 %v1041, %v1032
        %v1330 = vpack.c.b16 %v1042, %v1033
        %v1331 = vpack.c.b16 %v1043, %v1034
        %v1332 = vpack.c.b16 %v1044, %v1035
        %v1333 = vpack.c.b16 %v1045, %v1036
        %v1334 = vpack.c.b16 %v1046, %v1037
        %v1335 = vpack.c.b16 %v1056, %v1047
        %v1336 = vpack.c.b16 %v1057, %v1048
        %v1337 = vpack.c.b16 %v1058, %v1049
        %v1338 = vpack.c.b16 %v1059, %v1050
        %v1339 = vpack.c.b16 %v1060, %v1051
        %v1340 = vpack.c.b16 %v1061, %v1052
        %v1341 = vpack.c.b16 %v1062, %v1053
        %v1342 = vpack.c.b16 %v1063, %v1054
        %v1343 = vpack.c.b16 %v1064, %v1055
        %v1344 = vpack.c.b16 %v1074, %v1065
        %v1345 = vpack.c.b16 %v1075, %v1066
        %v1346 = vpack.c.b16 %v1076, %v1067
        %v1347 = vpack.c.b16 %v1077, %v1068
        %v1348 = vpack.c.b16 %v1078, %v1069
        %v1349 = vpack.c.b16 %v1079, %v1070
        %v1350 = vpack.c.b16 %v1080, %v1071
        %v1351 = vpack.c.b16 %v1081, %v1072
        %v1352 = vpack.c.b16 %v1082, %v1073
        %v1353 = vpack.c.b16 %v1092, %v1083
        %v1354 = vpack.c.b16 %v1093, %v1084
        %v1355 = vpack.c.b16 %v1094, %v1085
        %v1356 = vpack.c.b16 %v1095, %v1086
        %v1357 = vpack.c.b16 %v1096, %v1087
        %v1358 = vpack.c.b16 %v1097, %v1088
        %v1359 = vpack.c.b16 %v1098, %v1089
        %v1360 = vpack.c.b16 %v1099, %v1090
        %v1361 = vpack.c.b16 %v1100, %v1091
        %v1362 = vpack.c.b16 %v1110, %v1101
        %v1363 = vpack.c.b16 %v1111, %v1102
        %v1364 = vpack.c.b16 %v1112, %v1103
        %v1365 = vpack.c.b16 %v1113, %v1104
        %v1366 = vpack.c.b16 %v1114, %v1105
        %v1367 = vpack.c.b16 %v1115, %v1106
        %v1368 = vpack.c.b16 %v1116, %v1107
        %v1369 = vpack.c.b16 %v1117, %v1108
        %v1370 = vpack.c.b16 %v1118, %v1109
        %v1371 = vpack.c.b16 %v1128, %v1119
        %v1372 = vpack.c.b16 %v1129, %v1120
        %v1373 = vpack.c.b16 %v1130, %v1121
        %v1374 = vpack.c.b16 %v1131, %v1122
        %v1375 = vpack.c.b16 %v1132, %v1123
        %v1376 = vpack.c.b16 %v1133, %v1124
        %v1377 = vpack.c.b16 %v1134, %v1125
        %v1378 = vpack.c.b16 %v1135, %v1126
        %v1379 = vpack.c.b16 %v1136, %v1127
        %v1380 = vpack.c.b16 %v1146, %v1137
        %v1381 = vpack.c.b16 %v1147, %v1138
        %v1382 = vpack.c.b16 %v1148, %v1139
        %v1383 = vpack.c.b16 %v1149, %v1140
        %v1384 = vpack.c.b16 %v1150, %v1141
        %v1385 = vpack.c.b16 %v1151, %v1142
        %v1386 = vpack.c.b16 %v1152, %v1143
        %v1387 = vpack.c.b16 %v1153, %v1144
        %v1388 = vpack.c.b16 %v1154, %v1145
        %v1389 = vpack.c.b16 %v1164, %v1155
        %v1390 = vpack.c.b16 %v1165, %v1156
        %v1391 = vpack.c.b16 %v1166, %v1157
        %v1392 = vpack.c.b16 %v1167, %v1158
        %v1393 = vpack.c.b16 %v1168, %v1159
        %v1394 = vpack.c.b16 %v1169, %v1160
        %v1395 = vpack.c.b16 %v1170, %v1161
        %v1396 = vpack.c.b16 %v1171, %v1162
        %v1397 = vpack.c.b16 %v1172, %v1163
        %v1398 = vpack.c.b16 %v1182, %v1173
        %v1399 = vpack.c.b16 %v1183, %v1174
        %v1400 = vpack.c.b16 %v1184, %v1175
        %v1401 = vpack.c.b16 %v1185, %v1176
        %v1402 = vpack.c.b16 %v1186, %v1177
        %v1403 = vpack.c.b16 %v1187, %v1178
        %v1404 = vpack.c.b16 %v1188, %v1179
        %v1405 = vpack.c.b16 %v1189, %v1180
        %v1406 = vpack.c.b16 %v1190, %v1181
        %1623 = vmatprep.subr.bf16.mxu0 %v1192
        %1624 = vmatpush1.bf16.msra.mxu0 %v1191
        %1625 = vmatprep.subr.bf16.mxu0 %v1201
        %1626 = vmatpush1.bf16.msra.mxu0 %v1200
        %1627 = vmatprep.subr.bf16.mxu0 %v1210
        %1628 = vmatpush1.bf16.msra.mxu0 %v1209
        %1629 = vmatprep.subr.bf16.mxu0 %v1219
        %1630 = vmatpush1.bf16.msra.mxu0 %v1218
        %1631 = vmatprep.subr.bf16.mxu0 %v1228
        %1632 = vmatpush1.bf16.msra.mxu0 %v1227
        %1633 = vmatprep.subr.bf16.mxu0 %v1237
        %1634 = vmatpush1.bf16.msra.mxu0 %v1236
        %1635 = vmatprep.subr.bf16.mxu0 %v1246
        %1636 = vmatpush1.bf16.msra.mxu0 %v1245
        %1637 = vmatprep.subr.bf16.mxu0 %v1255
        %1638 = vmatpush1.bf16.msra.mxu0 %v1254
        %1639 = vmatprep.subr.bf16.mxu0 %v1264
        %1640 = vmatpush1.bf16.msra.mxu0 %v1263
        %1641 = vmatprep.subr.bf16.mxu0 %v1273
        %1642 = vmatpush1.bf16.msra.mxu0 %v1272
        %1643 = vmatprep.subr.bf16.mxu0 %v1282
        %1644 = vmatpush1.bf16.msra.mxu0 %v1281
        %1645 = vmatprep.subr.bf16.mxu0 %v1291
        %1646 = vmatpush1.bf16.msra.mxu0 %v1290
        %1647 = vmatprep.subr.bf16.mxu0 %v1300
        %1648 = vmatpush1.bf16.msra.mxu0 %v1299
        %1649 = vmatprep.subr.bf16.mxu0 %v1309
        %1650 = vmatpush1.bf16.msra.mxu0 %v1308
        %1651 = vmatprep.subr.bf16.mxu0 %v1318
        %1652 = vmatpush1.bf16.msra.mxu0 %v1317
        %1653 = vmatprep.subr.bf16.mxu0 %v1327
        %1654 = vmatpush1.bf16.msra.mxu0 %v1326
        %1655 = vmatprep.mubr.bf16.mxu0 %v496
        %1656 = vmatmul.mubr.bf16.gmra.mrb[0].mxu0 %v495
        %v1657 = vpop.f32.mrb[0].mxu0
        %v1658 = vadd.f32 0.0, %v1657
        %v1659 = vpop.f32.mrb[0].mxu0
        %v1660 = vadd.f32 0.0, %v1659
        %v1661 = vpop.f32.mrb[0].mxu0
        %v1662 = vadd.f32 0.0, %v1661
        %v1663 = vpop.f32.mrb[0].mxu0
        %v1664 = vadd.f32 0.0, %v1663
        %1665 = vmatprep.mubr.bf16.mxu0 %v499
        %1666 = vmatmul.mubr.bf16.gmra.mrb[0].mxu0 %v498
        %v1667 = vpop.f32.mrb[0].mxu0
        %v1668 = vadd.f32 0.0, %v1667
        %v1669 = vpop.f32.mrb[0].mxu0
        %v1670 = vadd.f32 0.0, %v1669
        %v1671 = vpop.f32.mrb[0].mxu0
        %v1672 = vadd.f32 0.0, %v1671
        %v1673 = vpop.f32.mrb[0].mxu0
        %v1674 = vadd.f32 0.0, %v1673
        %1675 = vmatprep.mubr.bf16.mxu0 %v502
        %1676 = vmatmul.mubr.bf16.gmra.mrb[0].mxu0 %v501
        %v1677 = vpop.f32.mrb[0].mxu0
        %v1678 = vadd.f32 0.0, %v1677
        %v1679 = vpop.f32.mrb[0].mxu0
        %v1680 = vadd.f32 0.0, %v1679
        %v1681 = vpop.f32.mrb[0].mxu0
        %v1682 = vadd.f32 0.0, %v1681
        %v1683 = vpop.f32.mrb[0].mxu0
        %v1684 = vadd.f32 0.0, %v1683
        %1685 = vmatprep.mubr.bf16.mxu0 %v505
        %1686 = vmatmul.mubr.bf16.gmra.mrb[0].mxu0 %v504
        %v1687 = vpop.f32.mrb[0].mxu0
        %v1688 = vadd.f32 0.0, %v1687
        %v1689 = vpop.f32.mrb[0].mxu0
        %v1690 = vadd.f32 0.0, %v1689
        %v1691 = vpop.f32.mrb[0].mxu0
        %v1692 = vadd.f32 0.0, %v1691
        %v1693 = vpop.f32.mrb[0].mxu0
        %v1694 = vadd.f32 0.0, %v1693
        %1695 = vdwg.mxu0
        %1696 = vmatprep.subr.bf16.mxu0 %v1336
        %1697 = vmatpush1.bf16.msra.mxu0 %v1335
        %1698 = vmatprep.subr.bf16.mxu0 %v1345
        %1699 = vmatpush1.bf16.msra.mxu0 %v1344
        %1700 = vmatprep.subr.bf16.mxu0 %v1354
        %1701 = vmatpush1.bf16.msra.mxu0 %v1353
        %1702 = vmatprep.subr.bf16.mxu0 %v1363
        %1703 = vmatpush1.bf16.msra.mxu0 %v1362
        %1704 = vmatprep.subr.bf16.mxu0 %v1372
        %1705 = vmatpush1.bf16.msra.mxu0 %v1371
        %1706 = vmatprep.subr.bf16.mxu0 %v1381
        %1707 = vmatpush1.bf16.msra.mxu0 %v1380
        %1708 = vmatprep.subr.bf16.mxu0 %v1390
        %1709 = vmatpush1.bf16.msra.mxu0 %v1389
        %1710 = vmatprep.subr.bf16.mxu0 %v1399
        %1711 = vmatpush1.bf16.msra.mxu0 %v1398
        %1712 = vmatprep.subr.bf16.mxu0 0
        %1713 = vmatpush1.bf16.msra.mxu0 0
        %1714 = vmatprep.subr.bf16.mxu0 0
        %1715 = vmatpush1.bf16.msra.mxu0 0
        %1716 = vmatprep.subr.bf16.mxu0 0
        %1717 = vmatpush1.bf16.msra.mxu0 0
        %1718 = vmatprep.subr.bf16.mxu0 0
        %1719 = vmatpush1.bf16.msra.mxu0 0
        %1720 = vmatprep.subr.bf16.mxu0 0
        %1721 = vmatpush1.bf16.msra.mxu0 0
        %1722 = vmatprep.subr.bf16.mxu0 0
        %1723 = vmatpush1.bf16.msra.mxu0 0
        %1724 = vmatprep.subr.bf16.mxu0 0
        %1725 = vmatpush1.bf16.msra.mxu0 0
        %1726 = vmatprep.subr.bf16.mxu0 0
        %1727 = vmatpush1.bf16.msra.mxu0 0
        %1728 = vmatprep.mubr.bf16.mxu0 0
        %1729 = vmatmul.mubr.bf16.gmra.mrb[0].mxu0 %v497
        %v1730 = vpop.f32.mrb[0].mxu0
        %v1731 = vadd.f32 %v1658, %v1730
        %v1732 = vpop.f32.mrb[0].mxu0
        %v1733 = vadd.f32 %v1660, %v1732
        %v1734 = vpop.f32.mrb[0].mxu0
        %v1735 = vadd.f32 %v1662, %v1734
        %v1736 = vpop.f32.mrb[0].mxu0
        %v1737 = vadd.f32 %v1664, %v1736
        %1738 = vmatprep.mubr.bf16.mxu0 0
        %1739 = vmatmul.mubr.bf16.gmra.mrb[0].mxu0 %v500
        %v1740 = vpop.f32.mrb[0].mxu0
        %v1741 = vadd.f32 %v1668, %v1740
        %v1742 = vpop.f32.mrb[0].mxu0
        %v1743 = vadd.f32 %v1670, %v1742
        %v1744 = vpop.f32.mrb[0].mxu0
        %v1745 = vadd.f32 %v1672, %v1744
        %v1746 = vpop.f32.mrb[0].mxu0
        %v1747 = vadd.f32 %v1674, %v1746
        %1748 = vmatprep.mubr.bf16.mxu0 0
        %1749 = vmatmul.mubr.bf16.gmra.mrb[0].mxu0 %v503
        %v1750 = vpop.f32.mrb[0].mxu0
        %v1751 = vadd.f32 %v1678, %v1750
        %v1752 = vpop.f32.mrb[0].mxu0
        %v1753 = vadd.f32 %v1680, %v1752
        %v1754 = vpop.f32.mrb[0].mxu0
        %v1755 = vadd.f32 %v1682, %v1754
        %v1756 = vpop.f32.mrb[0].mxu0
        %v1757 = vadd.f32 %v1684, %v1756
        %1758 = vmatprep.mubr.bf16.mxu0 0
        %1759 = vmatmul.mubr.bf16.gmra.mrb[0].mxu0 %v506
        %v1760 = vpop.f32.mrb[0].mxu0
        %v1761 = vadd.f32 %v1688, %v1760
        %v1762 = vpop.f32.mrb[0].mxu0
        %v1763 = vadd.f32 %v1690, %v1762
        %v1764 = vpop.f32.mrb[0].mxu0
        %v1765 = vadd.f32 %v1692, %v1764
        %v1766 = vpop.f32.mrb[0].mxu0
        %v1767 = vadd.f32 %v1694, %v1766
        %1768 = vdwg.mxu0
        %1769 = vmatprep.subr.bf16.mxu0 %v1194
        %1770 = vmatpush1.bf16.msra.mxu0 %v1193
        %1771 = vmatprep.subr.bf16.mxu0 %v1203
        %1772 = vmatpush1.bf16.msra.mxu0 %v1202
        %1773 = vmatprep.subr.bf16.mxu0 %v1212
        %1774 = vmatpush1.bf16.msra.mxu0 %v1211
        %1775 = vmatprep.subr.bf16.mxu0 %v1221
        %1776 = vmatpush1.bf16.msra.mxu0 %v1220
        %1777 = vmatprep.subr.bf16.mxu0 %v1230
        %1778 = vmatpush1.bf16.msra.mxu0 %v1229
        %1779 = vmatprep.subr.bf16.mxu0 %v1239
        %1780 = vmatpush1.bf16.msra.mxu0 %v1238
        %1781 = vmatprep.subr.bf16.mxu0 %v1248
        %1782 = vmatpush1.bf16.msra.mxu0 %v1247
        %1783 = vmatprep.subr.bf16.mxu0 %v1257
        %1784 = vmatpush1.bf16.msra.mxu0 %v1256
        %1785 = vmatprep.subr.bf16.mxu0 %v1266
        %1786 = vmatpush1.bf16.msra.mxu0 %v1265
        %1787 = vmatprep.subr.bf16.mxu0 %v1275
        %1788 = vmatpush1.bf16.msra.mxu0 %v1274
        %1789 = vmatprep.subr.bf16.mxu0 %v1284
        %1790 = vmatpush1.bf16.msra.mxu0 %v1283
        %1791 = vmatprep.subr.bf16.mxu0 %v1293
        %1792 = vmatpush1.bf16.msra.mxu0 %v1292
        %1793 = vmatprep.subr.bf16.mxu0 %v1302
        %1794 = vmatpush1.bf16.msra.mxu0 %v1301
        %1795 = vmatprep.subr.bf16.mxu0 %v1311
        %1796 = vmatpush1.bf16.msra.mxu0 %v1310
        %1797 = vmatprep.subr.bf16.mxu0 %v1320
        %1798 = vmatpush1.bf16.msra.mxu0 %v1319
        %1799 = vmatprep.subr.bf16.mxu0 %v1329
        %1800 = vmatpush1.bf16.msra.mxu0 %v1328
        %1801 = vmatprep.mubr.bf16.mxu0 %v496
        %1802 = vmatmul.mubr.bf16.gmra.mrb[0].mxu0 %v495
        %v1803 = vpop.f32.mrb[0].mxu0
        %v1804 = vadd.f32 0.0, %v1803
        %v1805 = vpop.f32.mrb[0].mxu0
        %v1806 = vadd.f32 0.0, %v1805
        %v1807 = vpop.f32.mrb[0].mxu0
        %v1808 = vadd.f32 0.0, %v1807
        %v1809 = vpop.f32.mrb[0].mxu0
        %v1810 = vadd.f32 0.0, %v1809
        %1811 = vmatprep.mubr.bf16.mxu0 %v499
        %1812 = vmatmul.mubr.bf16.gmra.mrb[0].mxu0 %v498
        %v1813 = vpop.f32.mrb[0].mxu0
        %v1814 = vadd.f32 0.0, %v1813
        %v1815 = vpop.f32.mrb[0].mxu0
        %v1816 = vadd.f32 0.0, %v1815
        %v1817 = vpop.f32.mrb[0].mxu0
        %v1818 = vadd.f32 0.0, %v1817
        %v1819 = vpop.f32.mrb[0].mxu0
        %v1820 = vadd.f32 0.0, %v1819
        %1821 = vmatprep.mubr.bf16.mxu0 %v502
        %1822 = vmatmul.mubr.bf16.gmra.mrb[0].mxu0 %v501
        %v1823 = vpop.f32.mrb[0].mxu0
        %v1824 = vadd.f32 0.0, %v1823
        %v1825 = vpop.f32.mrb[0].mxu0
        %v1826 = vadd.f32 0.0, %v1825
        %v1827 = vpop.f32.mrb[0].mxu0
        %v1828 = vadd.f32 0.0, %v1827
        %v1829 = vpop.f32.mrb[0].mxu0
        %v1830 = vadd.f32 0.0, %v1829
        %1831 = vmatprep.mubr.bf16.mxu0 %v505
        %1832 = vmatmul.mubr.bf16.gmra.mrb[0].mxu0 %v504
        %v1833 = vpop.f32.mrb[0].mxu0
        %v1834 = vadd.f32 0.0, %v1833
        %v1835 = vpop.f32.mrb[0].mxu0
        %v1836 = vadd.f32 0.0, %v1835
        %v1837 = vpop.f32.mrb[0].mxu0
        %v1838 = vadd.f32 0.0, %v1837
        %v1839 = vpop.f32.mrb[0].mxu0
        %v1840 = vadd.f32 0.0, %v1839
        %1841 = vdwg.mxu0
        %1842 = vmatprep.subr.bf16.mxu0 %v1338
        %1843 = vmatpush1.bf16.msra.mxu0 %v1337
        %1844 = vmatprep.subr.bf16.mxu0 %v1347
        %1845 = vmatpush1.bf16.msra.mxu0 %v1346
        %1846 = vmatprep.subr.bf16.mxu0 %v1356
        %1847 = vmatpush1.bf16.msra.mxu0 %v1355
        %1848 = vmatprep.subr.bf16.mxu0 %v1365
        %1849 = vmatpush1.bf16.msra.mxu0 %v1364
        %1850 = vmatprep.subr.bf16.mxu0 %v1374
        %1851 = vmatpush1.bf16.msra.mxu0 %v1373
        %1852 = vmatprep.subr.bf16.mxu0 %v1383
        %1853 = vmatpush1.bf16.msra.mxu0 %v1382
        %1854 = vmatprep.subr.bf16.mxu0 %v1392
        %1855 = vmatpush1.bf16.msra.mxu0 %v1391
        %1856 = vmatprep.subr.bf16.mxu0 %v1401
        %1857 = vmatpush1.bf16.msra.mxu0 %v1400
        %1858 = vmatprep.subr.bf16.mxu0 0
        %1859 = vmatpush1.bf16.msra.mxu0 0
        %1860 = vmatprep.subr.bf16.mxu0 0
        %1861 = vmatpush1.bf16.msra.mxu0 0
        %1862 = vmatprep.subr.bf16.mxu0 0
        %1863 = vmatpush1.bf16.msra.mxu0 0
        %1864 = vmatprep.subr.bf16.mxu0 0
        %1865 = vmatpush1.bf16.msra.mxu0 0
        %1866 = vmatprep.subr.bf16.mxu0 0
        %1867 = vmatpush1.bf16.msra.mxu0 0
        %1868 = vmatprep.subr.bf16.mxu0 0
        %1869 = vmatpush1.bf16.msra.mxu0 0
        %1870 = vmatprep.subr.bf16.mxu0 0
        %1871 = vmatpush1.bf16.msra.mxu0 0
        %1872 = vmatprep.subr.bf16.mxu0 0
        %1873 = vmatpush1.bf16.msra.mxu0 0
        %1874 = vmatprep.mubr.bf16.mxu0 0
        %1875 = vmatmul.mubr.bf16.gmra.mrb[0].mxu0 %v497
        %v1876 = vpop.f32.mrb[0].mxu0
        %v1877 = vadd.f32 %v1804, %v1876
        %v1878 = vpop.f32.mrb[0].mxu0
        %v1879 = vadd.f32 %v1806, %v1878
        %v1880 = vpop.f32.mrb[0].mxu0
        %v1881 = vadd.f32 %v1808, %v1880
        %v1882 = vpop.f32.mrb[0].mxu0
        %v1883 = vadd.f32 %v1810, %v1882
        %1884 = vmatprep.mubr.bf16.mxu0 0
        %1885 = vmatmul.mubr.bf16.gmra.mrb[0].mxu0 %v500
        %v1886 = vpop.f32.mrb[0].mxu0
        %v1887 = vadd.f32 %v1814, %v1886
        %v1888 = vpop.f32.mrb[0].mxu0
        %v1889 = vadd.f32 %v1816, %v1888
        %v1890 = vpop.f32.mrb[0].mxu0
        %v1891 = vadd.f32 %v1818, %v1890
        %v1892 = vpop.f32.mrb[0].mxu0
        %v1893 = vadd.f32 %v1820, %v1892
        %1894 = vmatprep.mubr.bf16.mxu0 0
        %1895 = vmatmul.mubr.bf16.gmra.mrb[0].mxu0 %v503
        %v1896 = vpop.f32.mrb[0].mxu0
        %v1897 = vadd.f32 %v1824, %v1896
        %v1898 = vpop.f32.mrb[0].mxu0
        %v1899 = vadd.f32 %v1826, %v1898
        %v1900 = vpop.f32.mrb[0].mxu0
        %v1901 = vadd.f32 %v1828, %v1900
        %v1902 = vpop.f32.mrb[0].mxu0
        %v1903 = vadd.f32 %v1830, %v1902
        %1904 = vmatprep.mubr.bf16.mxu0 0
        %1905 = vmatmul.mubr.bf16.gmra.mrb[0].mxu0 %v506
        %v1906 = vpop.f32.mrb[0].mxu0
        %v1907 = vadd.f32 %v1834, %v1906
        %v1908 = vpop.f32.mrb[0].mxu0
        %v1909 = vadd.f32 %v1836, %v1908
        %v1910 = vpop.f32.mrb[0].mxu0
        %v1911 = vadd.f32 %v1838, %v1910
        %v1912 = vpop.f32.mrb[0].mxu0
        %v1913 = vadd.f32 %v1840, %v1912
        %1914 = vdwg.mxu0
        %1915 = vmatprep.subr.bf16.mxu0 %v1196
        %1916 = vmatpush1.bf16.msra.mxu0 %v1195
        %1917 = vmatprep.subr.bf16.mxu0 %v1205
        %1918 = vmatpush1.bf16.msra.mxu0 %v1204
        %1919 = vmatprep.subr.bf16.mxu0 %v1214
        %1920 = vmatpush1.bf16.msra.mxu0 %v1213
        %1921 = vmatprep.subr.bf16.mxu0 %v1223
        %1922 = vmatpush1.bf16.msra.mxu0 %v1222
        %1923 = vmatprep.subr.bf16.mxu0 %v1232
        %1924 = vmatpush1.bf16.msra.mxu0 %v1231
        %1925 = vmatprep.subr.bf16.mxu0 %v1241
        %1926 = vmatpush1.bf16.msra.mxu0 %v1240
        %1927 = vmatprep.subr.bf16.mxu0 %v1250
        %1928 = vmatpush1.bf16.msra.mxu0 %v1249
        %1929 = vmatprep.subr.bf16.mxu0 %v1259
        %1930 = vmatpush1.bf16.msra.mxu0 %v1258
        %1931 = vmatprep.subr.bf16.mxu0 %v1268
        %1932 = vmatpush1.bf16.msra.mxu0 %v1267
        %1933 = vmatprep.subr.bf16.mxu0 %v1277
        %1934 = vmatpush1.bf16.msra.mxu0 %v1276
        %1935 = vmatprep.subr.bf16.mxu0 %v1286
        %1936 = vmatpush1.bf16.msra.mxu0 %v1285
        %1937 = vmatprep.subr.bf16.mxu0 %v1295
        %1938 = vmatpush1.bf16.msra.mxu0 %v1294
        %1939 = vmatprep.subr.bf16.mxu0 %v1304
        %1940 = vmatpush1.bf16.msra.mxu0 %v1303
        %1941 = vmatprep.subr.bf16.mxu0 %v1313
        %1942 = vmatpush1.bf16.msra.mxu0 %v1312
        %1943 = vmatprep.subr.bf16.mxu0 %v1322
        %1944 = vmatpush1.bf16.msra.mxu0 %v1321
        %1945 = vmatprep.subr.bf16.mxu0 %v1331
        %1946 = vmatpush1.bf16.msra.mxu0 %v1330
        %1947 = vmatprep.mubr.bf16.mxu0 %v496
        %1948 = vmatmul.mubr.bf16.gmra.mrb[0].mxu0 %v495
        %v1949 = vpop.f32.mrb[0].mxu0
        %v1950 = vadd.f32 0.0, %v1949
        %v1951 = vpop.f32.mrb[0].mxu0
        %v1952 = vadd.f32 0.0, %v1951
        %v1953 = vpop.f32.mrb[0].mxu0
        %v1954 = vadd.f32 0.0, %v1953
        %v1955 = vpop.f32.mrb[0].mxu0
        %v1956 = vadd.f32 0.0, %v1955
        %1957 = vmatprep.mubr.bf16.mxu0 %v499
        %1958 = vmatmul.mubr.bf16.gmra.mrb[0].mxu0 %v498
        %v1959 = vpop.f32.mrb[0].mxu0
        %v1960 = vadd.f32 0.0, %v1959
        %v1961 = vpop.f32.mrb[0].mxu0
        %v1962 = vadd.f32 0.0, %v1961
        %v1963 = vpop.f32.mrb[0].mxu0
        %v1964 = vadd.f32 0.0, %v1963
        %v1965 = vpop.f32.mrb[0].mxu0
        %v1966 = vadd.f32 0.0, %v1965
        %1967 = vmatprep.mubr.bf16.mxu0 %v502
        %1968 = vmatmul.mubr.bf16.gmra.mrb[0].mxu0 %v501
        %v1969 = vpop.f32.mrb[0].mxu0
        %v1970 = vadd.f32 0.0, %v1969
        %v1971 = vpop.f32.mrb[0].mxu0
        %v1972 = vadd.f32 0.0, %v1971
        %v1973 = vpop.f32.mrb[0].mxu0
        %v1974 = vadd.f32 0.0, %v1973
        %v1975 = vpop.f32.mrb[0].mxu0
        %v1976 = vadd.f32 0.0, %v1975
        %1977 = vmatprep.mubr.bf16.mxu0 %v505
        %1978 = vmatmul.mubr.bf16.gmra.mrb[0].mxu0 %v504
        %v1979 = vpop.f32.mrb[0].mxu0
        %v1980 = vadd.f32 0.0, %v1979
        %v1981 = vpop.f32.mrb[0].mxu0
        %v1982 = vadd.f32 0.0, %v1981
        %v1983 = vpop.f32.mrb[0].mxu0
        %v1984 = vadd.f32 0.0, %v1983
        %v1985 = vpop.f32.mrb[0].mxu0
        %v1986 = vadd.f32 0.0, %v1985
        %1987 = vdwg.mxu0
        %1988 = vmatprep.subr.bf16.mxu0 %v1340
        %1989 = vmatpush1.bf16.msra.mxu0 %v1339
        %1990 = vmatprep.subr.bf16.mxu0 %v1349
        %1991 = vmatpush1.bf16.msra.mxu0 %v1348
        %1992 = vmatprep.subr.bf16.mxu0 %v1358
        %1993 = vmatpush1.bf16.msra.mxu0 %v1357
        %1994 = vmatprep.subr.bf16.mxu0 %v1367
        %1995 = vmatpush1.bf16.msra.mxu0 %v1366
        %1996 = vmatprep.subr.bf16.mxu0 %v1376
        %1997 = vmatpush1.bf16.msra.mxu0 %v1375
        %1998 = vmatprep.subr.bf16.mxu0 %v1385
        %1999 = vmatpush1.bf16.msra.mxu0 %v1384
        %2000 = vmatprep.subr.bf16.mxu0 %v1394
        %2001 = vmatpush1.bf16.msra.mxu0 %v1393
        %2002 = vmatprep.subr.bf16.mxu0 %v1403
        %2003 = vmatpush1.bf16.msra.mxu0 %v1402
        %2004 = vmatprep.subr.bf16.mxu0 0
        %2005 = vmatpush1.bf16.msra.mxu0 0
        %2006 = vmatprep.subr.bf16.mxu0 0
        %2007 = vmatpush1.bf16.msra.mxu0 0
        %2008 = vmatprep.subr.bf16.mxu0 0
        %2009 = vmatpush1.bf16.msra.mxu0 0
        %2010 = vmatprep.subr.bf16.mxu0 0
        %2011 = vmatpush1.bf16.msra.mxu0 0
        %2012 = vmatprep.subr.bf16.mxu0 0
        %2013 = vmatpush1.bf16.msra.mxu0 0
        %2014 = vmatprep.subr.bf16.mxu0 0
        %2015 = vmatpush1.bf16.msra.mxu0 0
        %2016 = vmatprep.subr.bf16.mxu0 0
        %2017 = vmatpush1.bf16.msra.mxu0 0
        %2018 = vmatprep.subr.bf16.mxu0 0
        %2019 = vmatpush1.bf16.msra.mxu0 0
        %2020 = vmatprep.mubr.bf16.mxu0 0
        %2021 = vmatmul.mubr.bf16.gmra.mrb[0].mxu0 %v497
        %v2022 = vpop.f32.mrb[0].mxu0
        %v2023 = vadd.f32 %v1950, %v2022
        %v2024 = vpop.f32.mrb[0].mxu0
        %v2025 = vadd.f32 %v1952, %v2024
        %v2026 = vpop.f32.mrb[0].mxu0
        %v2027 = vadd.f32 %v1954, %v2026
        %v2028 = vpop.f32.mrb[0].mxu0
        %v2029 = vadd.f32 %v1956, %v2028
        %2030 = vmatprep.mubr.bf16.mxu0 0
        %2031 = vmatmul.mubr.bf16.gmra.mrb[0].mxu0 %v500
        %v2032 = vpop.f32.mrb[0].mxu0
        %v2033 = vadd.f32 %v1960, %v2032
        %v2034 = vpop.f32.mrb[0].mxu0
        %v2035 = vadd.f32 %v1962, %v2034
        %v2036 = vpop.f32.mrb[0].mxu0
        %v2037 = vadd.f32 %v1964, %v2036
        %v2038 = vpop.f32.mrb[0].mxu0
        %v2039 = vadd.f32 %v1966, %v2038
        %2040 = vmatprep.mubr.bf16.mxu0 0
        %2041 = vmatmul.mubr.bf16.gmra.mrb[0].mxu0 %v503
        %v2042 = vpop.f32.mrb[0].mxu0
        %v2043 = vadd.f32 %v1970, %v2042
        %v2044 = vpop.f32.mrb[0].mxu0
        %v2045 = vadd.f32 %v1972, %v2044
        %v2046 = vpop.f32.mrb[0].mxu0
        %v2047 = vadd.f32 %v1974, %v2046
        %v2048 = vpop.f32.mrb[0].mxu0
        %v2049 = vadd.f32 %v1976, %v2048
        %2050 = vmatprep.mubr.bf16.mxu0 0
        %2051 = vmatmul.mubr.bf16.gmra.mrb[0].mxu0 %v506
        %v2052 = vpop.f32.mrb[0].mxu0
        %v2053 = vadd.f32 %v1980, %v2052
        %v2054 = vpop.f32.mrb[0].mxu0
        %v2055 = vadd.f32 %v1982, %v2054
        %v2056 = vpop.f32.mrb[0].mxu0
        %v2057 = vadd.f32 %v1984, %v2056
        %v2058 = vpop.f32.mrb[0].mxu0
        %v2059 = vadd.f32 %v1986, %v2058
        %2060 = vdwg.mxu0
        %2061 = vmatprep.subr.bf16.mxu0 %v1198
        %2062 = vmatpush1.bf16.msra.mxu0 %v1197
        %2063 = vmatprep.subr.bf16.mxu0 %v1207
        %2064 = vmatpush1.bf16.msra.mxu0 %v1206
        %2065 = vmatprep.subr.bf16.mxu0 %v1216
        %2066 = vmatpush1.bf16.msra.mxu0 %v1215
        %2067 = vmatprep.subr.bf16.mxu0 %v1225
        %2068 = vmatpush1.bf16.msra.mxu0 %v1224
        %2069 = vmatprep.subr.bf16.mxu0 %v1234
        %2070 = vmatpush1.bf16.msra.mxu0 %v1233
        %2071 = vmatprep.subr.bf16.mxu0 %v1243
        %2072 = vmatpush1.bf16.msra.mxu0 %v1242
        %2073 = vmatprep.subr.bf16.mxu0 %v1252
        %2074 = vmatpush1.bf16.msra.mxu0 %v1251
        %2075 = vmatprep.subr.bf16.mxu0 %v1261
        %2076 = vmatpush1.bf16.msra.mxu0 %v1260
        %2077 = vmatprep.subr.bf16.mxu0 %v1270
        %2078 = vmatpush1.bf16.msra.mxu0 %v1269
        %2079 = vmatprep.subr.bf16.mxu0 %v1279
        %2080 = vmatpush1.bf16.msra.mxu0 %v1278
        %2081 = vmatprep.subr.bf16.mxu0 %v1288
        %2082 = vmatpush1.bf16.msra.mxu0 %v1287
        %2083 = vmatprep.subr.bf16.mxu0 %v1297
        %2084 = vmatpush1.bf16.msra.mxu0 %v1296
        %2085 = vmatprep.subr.bf16.mxu0 %v1306
        %2086 = vmatpush1.bf16.msra.mxu0 %v1305
        %2087 = vmatprep.subr.bf16.mxu0 %v1315
        %2088 = vmatpush1.bf16.msra.mxu0 %v1314
        %2089 = vmatprep.subr.bf16.mxu0 %v1324
        %2090 = vmatpush1.bf16.msra.mxu0 %v1323
        %2091 = vmatprep.subr.bf16.mxu0 %v1333
        %2092 = vmatpush1.bf16.msra.mxu0 %v1332
        %2093 = vmatprep.mubr.bf16.mxu0 %v496
        %2094 = vmatmul.mubr.bf16.gmra.mrb[0].mxu0 %v495
        %v2095 = vpop.f32.mrb[0].mxu0
        %v2096 = vadd.f32 0.0, %v2095
        %v2097 = vpop.f32.mrb[0].mxu0
        %v2098 = vadd.f32 0.0, %v2097
        %v2099 = vpop.f32.mrb[0].mxu0
        %v2100 = vadd.f32 0.0, %v2099
        %v2101 = vpop.f32.mrb[0].mxu0
        %v2102 = vadd.f32 0.0, %v2101
        %2103 = vmatprep.mubr.bf16.mxu0 %v499
        %2104 = vmatmul.mubr.bf16.gmra.mrb[0].mxu0 %v498
        %v2105 = vpop.f32.mrb[0].mxu0
        %v2106 = vadd.f32 0.0, %v2105
        %v2107 = vpop.f32.mrb[0].mxu0
        %v2108 = vadd.f32 0.0, %v2107
        %v2109 = vpop.f32.mrb[0].mxu0
        %v2110 = vadd.f32 0.0, %v2109
        %v2111 = vpop.f32.mrb[0].mxu0
        %v2112 = vadd.f32 0.0, %v2111
        %2113 = vmatprep.mubr.bf16.mxu0 %v502
        %2114 = vmatmul.mubr.bf16.gmra.mrb[0].mxu0 %v501
        %v2115 = vpop.f32.mrb[0].mxu0
        %v2116 = vadd.f32 0.0, %v2115
        %v2117 = vpop.f32.mrb[0].mxu0
        %v2118 = vadd.f32 0.0, %v2117
        %v2119 = vpop.f32.mrb[0].mxu0
        %v2120 = vadd.f32 0.0, %v2119
        %v2121 = vpop.f32.mrb[0].mxu0
        %v2122 = vadd.f32 0.0, %v2121
        %2123 = vmatprep.mubr.bf16.mxu0 %v505
        %2124 = vmatmul.mubr.bf16.gmra.mrb[0].mxu0 %v504
        %v2125 = vpop.f32.mrb[0].mxu0
        %v2126 = vadd.f32 0.0, %v2125
        %v2127 = vpop.f32.mrb[0].mxu0
        %v2128 = vadd.f32 0.0, %v2127
        %v2129 = vpop.f32.mrb[0].mxu0
        %v2130 = vadd.f32 0.0, %v2129
        %v2131 = vpop.f32.mrb[0].mxu0
        %v2132 = vadd.f32 0.0, %v2131
        %2133 = vdwg.mxu0
        %2134 = vmatprep.subr.bf16.mxu0 %v1342
        %2135 = vmatpush1.bf16.msra.mxu0 %v1341
        %2136 = vmatprep.subr.bf16.mxu0 %v1351
        %2137 = vmatpush1.bf16.msra.mxu0 %v1350
        %2138 = vmatprep.subr.bf16.mxu0 %v1360
        %2139 = vmatpush1.bf16.msra.mxu0 %v1359
        %2140 = vmatprep.subr.bf16.mxu0 %v1369
        %2141 = vmatpush1.bf16.msra.mxu0 %v1368
        %2142 = vmatprep.subr.bf16.mxu0 %v1378
        %2143 = vmatpush1.bf16.msra.mxu0 %v1377
        %2144 = vmatprep.subr.bf16.mxu0 %v1387
        %2145 = vmatpush1.bf16.msra.mxu0 %v1386
        %2146 = vmatprep.subr.bf16.mxu0 %v1396
        %2147 = vmatpush1.bf16.msra.mxu0 %v1395
        %2148 = vmatprep.subr.bf16.mxu0 %v1405
        %2149 = vmatpush1.bf16.msra.mxu0 %v1404
        %2150 = vmatprep.subr.bf16.mxu0 0
        %2151 = vmatpush1.bf16.msra.mxu0 0
        %2152 = vmatprep.subr.bf16.mxu0 0
        %2153 = vmatpush1.bf16.msra.mxu0 0
        %2154 = vmatprep.subr.bf16.mxu0 0
        %2155 = vmatpush1.bf16.msra.mxu0 0
        %2156 = vmatprep.subr.bf16.mxu0 0
        %2157 = vmatpush1.bf16.msra.mxu0 0
        %2158 = vmatprep.subr.bf16.mxu0 0
        %2159 = vmatpush1.bf16.msra.mxu0 0
        %2160 = vmatprep.subr.bf16.mxu0 0
        %2161 = vmatpush1.bf16.msra.mxu0 0
        %2162 = vmatprep.subr.bf16.mxu0 0
        %2163 = vmatpush1.bf16.msra.mxu0 0
        %2164 = vmatprep.subr.bf16.mxu0 0
        %2165 = vmatpush1.bf16.msra.mxu0 0
        %2166 = vmatprep.mubr.bf16.mxu0 0
        %2167 = vmatmul.mubr.bf16.gmra.mrb[0].mxu0 %v497
        %v2168 = vpop.f32.mrb[0].mxu0
        %v2169 = vadd.f32 %v2096, %v2168
        %v2170 = vpop.f32.mrb[0].mxu0
        %v2171 = vadd.f32 %v2098, %v2170
        %v2172 = vpop.f32.mrb[0].mxu0
        %v2173 = vadd.f32 %v2100, %v2172
        %v2174 = vpop.f32.mrb[0].mxu0
        %v2175 = vadd.f32 %v2102, %v2174
        %2176 = vmatprep.mubr.bf16.mxu0 0
        %2177 = vmatmul.mubr.bf16.gmra.mrb[0].mxu0 %v500
        %v2178 = vpop.f32.mrb[0].mxu0
        %v2179 = vadd.f32 %v2106, %v2178
        %v2180 = vpop.f32.mrb[0].mxu0
        %v2181 = vadd.f32 %v2108, %v2180
        %v2182 = vpop.f32.mrb[0].mxu0
        %v2183 = vadd.f32 %v2110, %v2182
        %v2184 = vpop.f32.mrb[0].mxu0
        %v2185 = vadd.f32 %v2112, %v2184
        %2186 = vmatprep.mubr.bf16.mxu0 0
        %2187 = vmatmul.mubr.bf16.gmra.mrb[0].mxu0 %v503
        %v2188 = vpop.f32.mrb[0].mxu0
        %v2189 = vadd.f32 %v2116, %v2188
        %v2190 = vpop.f32.mrb[0].mxu0
        %v2191 = vadd.f32 %v2118, %v2190
        %v2192 = vpop.f32.mrb[0].mxu0
        %v2193 = vadd.f32 %v2120, %v2192
        %v2194 = vpop.f32.mrb[0].mxu0
        %v2195 = vadd.f32 %v2122, %v2194
        %2196 = vmatprep.mubr.bf16.mxu0 0
        %2197 = vmatmul.mubr.bf16.gmra.mrb[0].mxu0 %v506
        %v2198 = vpop.f32.mrb[0].mxu0
        %v2199 = vadd.f32 %v2126, %v2198
        %v2200 = vpop.f32.mrb[0].mxu0
        %v2201 = vadd.f32 %v2128, %v2200
        %v2202 = vpop.f32.mrb[0].mxu0
        %v2203 = vadd.f32 %v2130, %v2202
        %v2204 = vpop.f32.mrb[0].mxu0
        %v2205 = vadd.f32 %v2132, %v2204
        %2206 = vdwg.mxu0
        %2207 = vmatprep.subr.bf16.mxu0 0
        %2208 = vmatpush1.bf16.msra.mxu0 %v1199
        %2209 = vmatprep.subr.bf16.mxu0 0
        %2210 = vmatpush1.bf16.msra.mxu0 %v1208
        %2211 = vmatprep.subr.bf16.mxu0 0
        %2212 = vmatpush1.bf16.msra.mxu0 %v1217
        %2213 = vmatprep.subr.bf16.mxu0 0
        %2214 = vmatpush1.bf16.msra.mxu0 %v1226
        %2215 = vmatprep.subr.bf16.mxu0 0
        %2216 = vmatpush1.bf16.msra.mxu0 %v1235
        %2217 = vmatprep.subr.bf16.mxu0 0
        %2218 = vmatpush1.bf16.msra.mxu0 %v1244
        %2219 = vmatprep.subr.bf16.mxu0 0
        %2220 = vmatpush1.bf16.msra.mxu0 %v1253
        %2221 = vmatprep.subr.bf16.mxu0 0
        %2222 = vmatpush1.bf16.msra.mxu0 %v1262
        %2223 = vmatprep.subr.bf16.mxu0 0
        %2224 = vmatpush1.bf16.msra.mxu0 %v1271
        %2225 = vmatprep.subr.bf16.mxu0 0
        %2226 = vmatpush1.bf16.msra.mxu0 %v1280
        %2227 = vmatprep.subr.bf16.mxu0 0
        %2228 = vmatpush1.bf16.msra.mxu0 %v1289
        %2229 = vmatprep.subr.bf16.mxu0 0
        %2230 = vmatpush1.bf16.msra.mxu0 %v1298
        %2231 = vmatprep.subr.bf16.mxu0 0
        %2232 = vmatpush1.bf16.msra.mxu0 %v1307
        %2233 = vmatprep.subr.bf16.mxu0 0
        %2234 = vmatpush1.bf16.msra.mxu0 %v1316
        %2235 = vmatprep.subr.bf16.mxu0 0
        %2236 = vmatpush1.bf16.msra.mxu0 %v1325
        %2237 = vmatprep.subr.bf16.mxu0 0
        %2238 = vmatpush1.bf16.msra.mxu0 %v1334
        %2239 = vmatprep.mubr.bf16.mxu0 %v496
        %2240 = vmatmul.mubr.bf16.gmra.mrb[0].mxu0 %v495
        %v2241 = vpop.f32.mrb[0].mxu0
        %v2242 = vadd.f32 0.0, %v2241
        %v2243 = vpop.f32.mrb[0].mxu0
        %v2244 = vpop.f32.mrb[0].mxu0
        %v2245 = vadd.f32 0.0, %v2244
        %v2246 = vpop.f32.mrb[0].mxu0
        %2247 = vmatprep.mubr.bf16.mxu0 %v499
        %2248 = vmatmul.mubr.bf16.gmra.mrb[0].mxu0 %v498
        %v2249 = vpop.f32.mrb[0].mxu0
        %v2250 = vadd.f32 0.0, %v2249
        %v2251 = vpop.f32.mrb[0].mxu0
        %v2252 = vpop.f32.mrb[0].mxu0
        %v2253 = vadd.f32 0.0, %v2252
        %v2254 = vpop.f32.mrb[0].mxu0
        %2255 = vmatprep.mubr.bf16.mxu0 %v502
        %2256 = vmatmul.mubr.bf16.gmra.mrb[0].mxu0 %v501
        %v2257 = vpop.f32.mrb[0].mxu0
        %v2258 = vadd.f32 0.0, %v2257
        %v2259 = vpop.f32.mrb[0].mxu0
        %v2260 = vpop.f32.mrb[0].mxu0
        %v2261 = vadd.f32 0.0, %v2260
        %v2262 = vpop.f32.mrb[0].mxu0
        %2263 = vmatprep.mubr.bf16.mxu0 %v505
        %2264 = vmatmul.mubr.bf16.gmra.mrb[0].mxu0 %v504
        %v2265 = vpop.f32.mrb[0].mxu0
        %v2266 = vadd.f32 0.0, %v2265
        %v2267 = vpop.f32.mrb[0].mxu0
        %v2268 = vpop.f32.mrb[0].mxu0
        %v2269 = vadd.f32 0.0, %v2268
        %v2270 = vpop.f32.mrb[0].mxu0
        %2271 = vdwg.mxu0
        %2272 = vmatprep.subr.bf16.mxu0 0
        %2273 = vmatpush1.bf16.msra.mxu0 %v1343
        %2274 = vmatprep.subr.bf16.mxu0 0
        %2275 = vmatpush1.bf16.msra.mxu0 %v1352
        %2276 = vmatprep.subr.bf16.mxu0 0
        %2277 = vmatpush1.bf16.msra.mxu0 %v1361
        %2278 = vmatprep.subr.bf16.mxu0 0
        %2279 = vmatpush1.bf16.msra.mxu0 %v1370
        %2280 = vmatprep.subr.bf16.mxu0 0
        %2281 = vmatpush1.bf16.msra.mxu0 %v1379
        %2282 = vmatprep.subr.bf16.mxu0 0
        %2283 = vmatpush1.bf16.msra.mxu0 %v1388
        %2284 = vmatprep.subr.bf16.mxu0 0
        %2285 = vmatpush1.bf16.msra.mxu0 %v1397
        %2286 = vmatprep.subr.bf16.mxu0 0
        %2287 = vmatpush1.bf16.msra.mxu0 %v1406
        %2288 = vmatprep.subr.bf16.mxu0 0
        %2289 = vmatpush1.bf16.msra.mxu0 0
        %2290 = vmatprep.subr.bf16.mxu0 0
        %2291 = vmatpush1.bf16.msra.mxu0 0
        %2292 = vmatprep.subr.bf16.mxu0 0
        %2293 = vmatpush1.bf16.msra.mxu0 0
        %2294 = vmatprep.subr.bf16.mxu0 0
        %2295 = vmatpush1.bf16.msra.mxu0 0
        %2296 = vmatprep.subr.bf16.mxu0 0
        %2297 = vmatpush1.bf16.msra.mxu0 0
        %2298 = vmatprep.subr.bf16.mxu0 0
        %2299 = vmatpush1.bf16.msra.mxu0 0
        %2300 = vmatprep.subr.bf16.mxu0 0
        %2301 = vmatpush1.bf16.msra.mxu0 0
        %2302 = vmatprep.subr.bf16.mxu0 0
        %2303 = vmatpush1.bf16.msra.mxu0 0
        %2304 = vmatprep.mubr.bf16.mxu0 0
        %2305 = vmatmul.mubr.bf16.gmra.mrb[0].mxu0 %v497
        %v2306 = vpop.f32.mrb[0].mxu0
        %v2307 = vadd.f32 %v2242, %v2306
        %v2308 = vpop.f32.mrb[0].mxu0
        %v2309 = vpop.f32.mrb[0].mxu0
        %v2310 = vadd.f32 %v2245, %v2309
        %v2311 = vpop.f32.mrb[0].mxu0
        %2312 = vmatprep.mubr.bf16.mxu0 0
        %2313 = vmatmul.mubr.bf16.gmra.mrb[0].mxu0 %v500
        %v2314 = vpop.f32.mrb[0].mxu0
        %v2315 = vadd.f32 %v2250, %v2314
        %v2316 = vpop.f32.mrb[0].mxu0
        %v2317 = vpop.f32.mrb[0].mxu0
        %v2318 = vadd.f32 %v2253, %v2317
        %v2319 = vpop.f32.mrb[0].mxu0
        %2320 = vmatprep.mubr.bf16.mxu0 0
        %2321 = vmatmul.mubr.bf16.gmra.mrb[0].mxu0 %v503
        %v2322 = vpop.f32.mrb[0].mxu0
        %v2323 = vadd.f32 %v2258, %v2322
        %v2324 = vpop.f32.mrb[0].mxu0
        %v2325 = vpop.f32.mrb[0].mxu0
        %v2326 = vadd.f32 %v2261, %v2325
        %v2327 = vpop.f32.mrb[0].mxu0
        %2328 = vmatprep.mubr.bf16.mxu0 0
        %2329 = vmatmul.mubr.bf16.gmra.mrb[0].mxu0 %v506
        %v2330 = vpop.f32.mrb[0].mxu0
        %v2331 = vadd.f32 %v2266, %v2330
        %v2332 = vpop.f32.mrb[0].mxu0
        %v2333 = vpop.f32.mrb[0].mxu0
        %v2334 = vadd.f32 %v2269, %v2333
        %v2335 = vpop.f32.mrb[0].mxu0
        %2336 = vdwg.mxu0
        %v2337 = vpack.c.bf16 %v1735, %v1731
        %v2338 = vpack.c.bf16 %v1737, %v1733
        %v2339 = vpack.c.bf16 %v1881, %v1877
        %v2340 = vpack.c.bf16 %v1883, %v1879
        %v2341 = vpack.c.bf16 %v2027, %v2023
        %v2342 = vpack.c.bf16 %v2029, %v2025
        %v2343 = vpack.c.bf16 %v2173, %v2169
        %v2344 = vpack.c.bf16 %v2175, %v2171
        %v2345 = vpack.c.bf16 %v2310, %v2307
        %v2346 = vpack.c.bf16 %v1745, %v1741
        %v2347 = vpack.c.bf16 %v1747, %v1743
        %v2348 = vpack.c.bf16 %v1891, %v1887
        %v2349 = vpack.c.bf16 %v1893, %v1889
        %v2350 = vpack.c.bf16 %v2037, %v2033
        %v2351 = vpack.c.bf16 %v2039, %v2035
        %v2352 = vpack.c.bf16 %v2183, %v2179
        %v2353 = vpack.c.bf16 %v2185, %v2181
        %v2354 = vpack.c.bf16 %v2318, %v2315
        %v2355 = vpack.c.bf16 %v1755, %v1751
        %v2356 = vpack.c.bf16 %v1757, %v1753
        %v2357 = vpack.c.bf16 %v1901, %v1897
        %v2358 = vpack.c.bf16 %v1903, %v1899
        %v2359 = vpack.c.bf16 %v2047, %v2043
        %v2360 = vpack.c.bf16 %v2049, %v2045
        %v2361 = vpack.c.bf16 %v2193, %v2189
        %v2362 = vpack.c.bf16 %v2195, %v2191
        %v2363 = vpack.c.bf16 %v2326, %v2323
        %v2364 = vpack.c.bf16 %v1765, %v1761
        %v2365 = vpack.c.bf16 %v1767, %v1763
        %v2366 = vpack.c.bf16 %v1911, %v1907
        %v2367 = vpack.c.bf16 %v1913, %v1909
        %v2368 = vpack.c.bf16 %v2057, %v2053
        %v2369 = vpack.c.bf16 %v2059, %v2055
        %v2370 = vpack.c.bf16 %v2203, %v2199
        %v2371 = vpack.c.bf16 %v2205, %v2201
        %v2372 = vpack.c.bf16 %v2334, %v2331
        %v2409 = vunpack.c.l.b16 %v2337
        %v2410 = vunpack.c.l.b16 %v2338
        %v2411 = vunpack.c.l.b16 %v2339
        %v2412 = vunpack.c.l.b16 %v2340
        %v2413 = vunpack.c.l.b16 %v2341
        %v2414 = vunpack.c.l.b16 %v2342
        %v2415 = vunpack.c.l.b16 %v2343
        %v2416 = vunpack.c.l.b16 %v2344
        %v2417 = vunpack.c.l.b16 %v2345
        %v2418 = vunpack.c.h.b16 %v2337
        %v2419 = vunpack.c.h.b16 %v2338
        %v2420 = vunpack.c.h.b16 %v2339
        %v2421 = vunpack.c.h.b16 %v2340
        %v2422 = vunpack.c.h.b16 %v2341
        %v2423 = vunpack.c.h.b16 %v2342
        %v2424 = vunpack.c.h.b16 %v2343
        %v2425 = vunpack.c.h.b16 %v2344
        %v2426 = vunpack.c.h.b16 %v2345
        %v2427 = vunpack.c.l.b16 %v2346
        %v2428 = vunpack.c.l.b16 %v2347
        %v2429 = vunpack.c.l.b16 %v2348
        %v2430 = vunpack.c.l.b16 %v2349
        %v2431 = vunpack.c.l.b16 %v2350
        %v2432 = vunpack.c.l.b16 %v2351
        %v2433 = vunpack.c.l.b16 %v2352
        %v2434 = vunpack.c.l.b16 %v2353
        %v2435 = vunpack.c.l.b16 %v2354
        %v2436 = vunpack.c.h.b16 %v2346
        %v2437 = vunpack.c.h.b16 %v2347
        %v2438 = vunpack.c.h.b16 %v2348
        %v2439 = vunpack.c.h.b16 %v2349
        %v2440 = vunpack.c.h.b16 %v2350
        %v2441 = vunpack.c.h.b16 %v2351
        %v2442 = vunpack.c.h.b16 %v2352
        %v2443 = vunpack.c.h.b16 %v2353
        %v2444 = vunpack.c.h.b16 %v2354
        %v2445 = vunpack.c.l.b16 %v2355
        %v2446 = vunpack.c.l.b16 %v2356
        %v2447 = vunpack.c.l.b16 %v2357
        %v2448 = vunpack.c.l.b16 %v2358
        %v2449 = vunpack.c.l.b16 %v2359
        %v2450 = vunpack.c.l.b16 %v2360
        %v2451 = vunpack.c.l.b16 %v2361
        %v2452 = vunpack.c.l.b16 %v2362
        %v2453 = vunpack.c.l.b16 %v2363
        %v2454 = vunpack.c.h.b16 %v2355
        %v2455 = vunpack.c.h.b16 %v2356
        %v2456 = vunpack.c.h.b16 %v2357
        %v2457 = vunpack.c.h.b16 %v2358
        %v2458 = vunpack.c.h.b16 %v2359
        %v2459 = vunpack.c.h.b16 %v2360
        %v2460 = vunpack.c.h.b16 %v2361
        %v2461 = vunpack.c.h.b16 %v2362
        %v2462 = vunpack.c.h.b16 %v2363
        %v2463 = vunpack.c.l.b16 %v2364
        %v2464 = vunpack.c.l.b16 %v2365
        %v2465 = vunpack.c.l.b16 %v2366
        %v2466 = vunpack.c.l.b16 %v2367
        %v2467 = vunpack.c.l.b16 %v2368
        %v2468 = vunpack.c.l.b16 %v2369
        %v2469 = vunpack.c.l.b16 %v2370
        %v2470 = vunpack.c.l.b16 %v2371
        %v2471 = vunpack.c.l.b16 %v2372
        %v2472 = vunpack.c.h.b16 %v2364
        %v2473 = vunpack.c.h.b16 %v2365
        %v2474 = vunpack.c.h.b16 %v2366
        %v2475 = vunpack.c.h.b16 %v2367
        %v2476 = vunpack.c.h.b16 %v2368
        %v2477 = vunpack.c.h.b16 %v2369
        %v2478 = vunpack.c.h.b16 %v2370
        %v2479 = vunpack.c.h.b16 %v2371
        %v2480 = vunpack.c.h.b16 %v2372
        %v2481 = vpack.c.b16 %v2410, %v2409
        %v2482 = vpack.c.b16 %v2412, %v2411
        %v2483 = vpack.c.b16 %v2414, %v2413
        %v2484 = vpack.c.b16 %v2416, %v2415
        %v2485 = vpack.c.b16 %v2417, %v2417
        %v2486 = vpack.c.b16 %v2419, %v2418
        %v2487 = vpack.c.b16 %v2421, %v2420
        %v2488 = vpack.c.b16 %v2423, %v2422
        %v2489 = vpack.c.b16 %v2425, %v2424
        %v2490 = vpack.c.b16 %v2426, %v2426
        %v2491 = vpack.c.b16 %v2428, %v2427
        %v2492 = vpack.c.b16 %v2430, %v2429
        %v2493 = vpack.c.b16 %v2432, %v2431
        %v2494 = vpack.c.b16 %v2434, %v2433
        %v2495 = vpack.c.b16 %v2435, %v2435
        %v2496 = vpack.c.b16 %v2437, %v2436
        %v2497 = vpack.c.b16 %v2439, %v2438
        %v2498 = vpack.c.b16 %v2441, %v2440
        %v2499 = vpack.c.b16 %v2443, %v2442
        %v2500 = vpack.c.b16 %v2444, %v2444
        %v2501 = vpack.c.b16 %v2446, %v2445
        %v2502 = vpack.c.b16 %v2448, %v2447
        %v2503 = vpack.c.b16 %v2450, %v2449
        %v2504 = vpack.c.b16 %v2452, %v2451
        %v2505 = vpack.c.b16 %v2453, %v2453
        %v2506 = vpack.c.b16 %v2455, %v2454
        %v2507 = vpack.c.b16 %v2457, %v2456
        %v2508 = vpack.c.b16 %v2459, %v2458
        %v2509 = vpack.c.b16 %v2461, %v2460
        %v2510 = vpack.c.b16 %v2462, %v2462
        %v2511 = vpack.c.b16 %v2464, %v2463
        %v2512 = vpack.c.b16 %v2466, %v2465
        %v2513 = vpack.c.b16 %v2468, %v2467
        %v2514 = vpack.c.b16 %v2470, %v2469
        %v2515 = vpack.c.b16 %v2471, %v2471
        %v2516 = vpack.c.b16 %v2473, %v2472
        %v2517 = vpack.c.b16 %v2475, %v2474
        %v2518 = vpack.c.b16 %v2477, %v2476
        %v2519 = vpack.c.b16 %v2479, %v2478
        %v2520 = vpack.c.b16 %v2480, %v2480
        %2561 = vst [vmem:[%s195] sm:$0xff] %v2481
        %2562 = vst [vmem:[%s195 + $0x8] sm:$0xff] %v2482
        %2563 = vst [vmem:[%s195 + $0x10] sm:$0xff] %v2483
        %2564 = vst [vmem:[%s195 + $0x18] sm:$0xff] %v2484
        %2565 = vst [vmem:[%s195 + $0x20] sm:$0xf] %v2485
        %2566 = vst [vmem:[%s195 + $0x24] sm:$0xff] %v2486
        %2567 = vst [vmem:[%s195 + $0x2c] sm:$0xff] %v2487
        %2568 = vst [vmem:[%s195 + $0x34] sm:$0xff] %v2488
        %2569 = vst [vmem:[%s195 + $0x3c] sm:$0xff] %v2489
        %2570 = vst [vmem:[%s195 + $0x44] sm:$0xf] %v2490
        %2571 = vst [vmem:[%s195 + $0x48] sm:$0xff] %v2491
        %2572 = vst [vmem:[%s195 + $0x50] sm:$0xff] %v2492
        %2573 = vst [vmem:[%s195 + $0x58] sm:$0xff] %v2493
        %2574 = vst [vmem:[%s195 + $0x60] sm:$0xff] %v2494
        %2575 = vst [vmem:[%s195 + $0x68] sm:$0xf] %v2495
        %2576 = vst [vmem:[%s195 + $0x6c] sm:$0xff] %v2496
        %2577 = vst [vmem:[%s195 + $0x74] sm:$0xff] %v2497
        %2578 = vst [vmem:[%s195 + $0x7c] sm:$0xff] %v2498
        %2579 = vst [vmem:[%s195 + $0x84] sm:$0xff] %v2499
        %2580 = vst [vmem:[%s195 + $0x8c] sm:$0xf] %v2500
        %2581 = vst [vmem:[%s195 + $0x90] sm:$0xff] %v2501
        %2582 = vst [vmem:[%s195 + $0x98] sm:$0xff] %v2502
        %2583 = vst [vmem:[%s195 + $0xa0] sm:$0xff] %v2503
        %2584 = vst [vmem:[%s195 + $0xa8] sm:$0xff] %v2504
        %2585 = vst [vmem:[%s195 + $0xb0] sm:$0xf] %v2505
        %2586 = vst [vmem:[%s195 + $0xb4] sm:$0xff] %v2506
        %2587 = vst [vmem:[%s195 + $0xbc] sm:$0xff] %v2507
        %2588 = vst [vmem:[%s195 + $0xc4] sm:$0xff] %v2508
        %2589 = vst [vmem:[%s195 + $0xcc] sm:$0xff] %v2509
        %2590 = vst [vmem:[%s195 + $0xd4] sm:$0xf] %v2510
        %2591 = vst [vmem:[%s195 + $0xd8] sm:$0xff] %v2511
        %2592 = vst [vmem:[%s195 + $0xe0] sm:$0xff] %v2512
        %2593 = vst [vmem:[%s195 + $0xe8] sm:$0xff] %v2513
        %2594 = vst [vmem:[%s195 + $0xf0] sm:$0xff] %v2514
        %2595 = vst [vmem:[%s195 + $0xf8] sm:$0xf] %v2515
        %2596 = vst [vmem:[%s195 + $0xfc] sm:$0xff] %v2516
        %2597 = vst [vmem:[%s195 + $0x104] sm:$0xff] %v2517
        %2598 = vst [vmem:[%s195 + $0x10c] sm:$0xff] %v2518
        %2599 = vst [vmem:[%s195 + $0x114] sm:$0xff] %v2519
        %2600 = vst [vmem:[%s195 + $0x11c] sm:$0xf] %v2520
        %s2601 = sand.u32 %s91, 1
        %s2602 = scalar_lea.sflag [#allocation4], %s2601
        %s2603 = sand.u32 %s91, 1
        %s2604 = smul.addr %s2603, 288
        %s2605 = scalar_lea.vmem [#allocation7], %s2604
        // Predicated region
        $region37: #{tpu_custom_call.1} parent=27 // pred_check
          %p2606 = pneg %p101
        $region38: #{tpu_custom_call.1} parent=27 // pred_check_branch
          %2608 = sbr.rel (%p2606) target = $region40
        $region39: #{tpu_custom_call.1} parent=27 // pred_region
          %s2609 = smul.u32 8, %s25
          %s2611 = ssub.s32 4608, 4608
          %2612 = vsyncadd %s2602, %s2611
          %s2613 = smul.addr %s2609, 9
          %s2614 = smul.addr %s24, 144
          %s2615 = sadd.s32 %s2613, %s2614
          %s2616 = smul.addr %s2615, 64
          %s2617 = scalar_lea.hbm %s2, %s2616
          %s2618 = sshll.u32 %s2605, 4
          %s2619 = int_to_ptr.vmem [resolvable:$true] %s2618
          %2624 = dma.vmem_to_hbm [thread:$0]  %s2619, 4608, %s2617, %s2602, 576, 576, 36
        $region40: #{tpu_custom_call.1} parent=27 // pred_fallthru
          _
      $region28: #{tpu_custom_call.1} parent=5 // pred_fallthru
        _
      %p2625 = scmp.le.s32.totalorder 2, %s15
      // Predicated region
      $region41: #{tpu_custom_call.1} parent=5 // pred_check
        %p2626 = pneg %p2625
      $region42: #{tpu_custom_call.1} parent=5 // pred_check_branch
        %2628 = sbr.rel (%p2626) target = $region44
      $region43: #{tpu_custom_call.1} parent=5 // pred_region
        %s2629 = ssub.s32 %s15, 2
        // Predicated region
        $region45: #{tpu_custom_call.1} parent=43 // pred_check
          %p2630 = pneg %p107
        $region46: #{tpu_custom_call.1} parent=43 // pred_check_branch
          %2632 = sbr.rel (%p2630) target = $region48
        $region47: #{tpu_custom_call.1} parent=43 // pred_region
          %s2633 = sand.u32 %s92, 1
          %s2634 = scalar_lea.sflag [#allocation4], %s2633
          %s2635 = sand.u32 %s92, 1
          %s2636 = smul.addr %s2635, 288
          %s2637 = scalar_lea.vmem [#allocation7], %s2636
          %2638 = dma.done %s2634, 4608
        $region48: #{tpu_custom_call.1} parent=43 // pred_fallthru
          _
      $region44: #{tpu_custom_call.1} parent=5 // pred_fallthru
        _
    $region6: #{tpu_custom_call.1} parent=1 // loop_footer
      %s19 = sadd.s32 1, %s15
    $region7: #{tpu_custom_call.1} parent=1 // loop_footer_branch
      %14 = sbr.rel target = $region3
    $region8: #{tpu_custom_call.1} parent=1 // loop_exit
      _
    %2639 = vsyncpa [#allocation3], 1
    %s2640 = scalar_lea.sflag [#allocation3], 1
    %2641 = vsyncpa %s2640, 1
    %2642 = vsyncpa [#allocation6], 1
    %2643 = vsyncpa [#allocation4], 1
    %s2644 = scalar_lea.sflag [#allocation4], 1
    %2645 = vsyncpa %s2644, 1

</llo_original>
